<compile_context>
chip_gen: v7x
topology: tpu7x:2x2x1
jax: 0.10.0
libtpu: 0.0.40
codegen_flags: <defaults>
</compile_context>

<pallas_src>
import functools
import math

import jax
import jax.numpy as jnp
from jax.experimental import pallas as pl
from jax.experimental.pallas import tpu as pltpu


def _layernorm(v, gamma, beta, eps=1e-5):
    mu = jnp.mean(v, axis=-1, keepdims=True)
    vc = v - mu
    var = jnp.mean(vc * vc, axis=-1, keepdims=True)
    return vc * jax.lax.rsqrt(var + eps) * gamma + beta


def self_att_kernel(vl_ref, x_ref,
                    gx_ref, bx_ref,
                    wk_ref, bk_ref, wv_ref, bv_ref, wq_ref, bq_ref, qscale_ref,
                    wy_ref, by_ref, wf1_ref, bf1_ref, wf2_ref, bf2_ref,
                    gz_ref, bz_ref,
                    z_ref, q_ref, k_ref, v_ref,
                    *, head_num, head_dim, block_b, att_scale):
    Bt = block_b
    _, T, F = x_ref.shape
    H, D = head_num, head_dim
    N = Bt * T

    x = x_ref[...].reshape(N, F)                       # (N, F) f32
    xn = _layernorm(x, gx_ref[0], bx_ref[0])           # f32
    xnb = xn.astype(jnp.bfloat16)

    def lin_relu(a_bf16, w_ref, b_ref):
        y = jnp.dot(a_bf16, w_ref[...],
                    preferred_element_type=jnp.float32) + b_ref[0]
        return jnp.maximum(y, 0.0)

    Kf = lin_relu(xnb, wk_ref, bk_ref)                 # (N, F) f32
    Vf = lin_relu(xnb, wv_ref, bv_ref)
    Q0 = lin_relu(xnb, wq_ref, bq_ref)
    Qf = Q0 * qscale_ref[0]                            # ScaleLayer (tiled per head)

    # Lane-dense slab outputs; head split/permute happens in the wrapper.
    q_ref[...] = Qf.reshape(Bt, T, F)
    k_ref[...] = Kf.reshape(Bt, T, F)
    v_ref[...] = Vf.reshape(Bt, T, F)

    Qb = Qf.astype(jnp.bfloat16)
    Kb = Kf.astype(jnp.bfloat16)
    Vb = Vf.astype(jnp.bfloat16)

    inv_scale = 1.0 / att_scale
    tq = jax.lax.broadcasted_iota(jnp.int32, (T, T), 0)   # query index
    tk = jax.lax.broadcasted_iota(jnp.int32, (T, T), 1)   # key index

    base = pl.program_id(0) * Bt
    y1_rows = []
    for b in range(Bt):                                # static small loops
        L = vl_ref[base + b]                           # scalar (SMEM prefetch)
        ok = (tq < L) & (tk < L)                       # query AND key valid
        y_cols = []
        for h in range(H):
            r0, r1 = b * T, (b + 1) * T
            c0, c1 = h * D, (h + 1) * D
            Qh = Qb[r0:r1, c0:c1]
            Kh = Kb[r0:r1, c0:c1]
            Vh = Vb[r0:r1, c0:c1]
            e = jax.lax.dot_general(
                Qh, Kh, (((1,), (1,)), ((), ())),
                preferred_element_type=jnp.float32) * inv_scale
            e = jnp.where(ok, e, -1e10)
            e = e - jnp.max(e, axis=-1, keepdims=True)
            p = jnp.exp(e)
            inv_denom = pl.reciprocal(jnp.sum(p, axis=-1, keepdims=True),
                                      approx=True)
            attn = p * inv_denom
            y_cols.append(jnp.dot(attn.astype(jnp.bfloat16), Vh,
                                  preferred_element_type=jnp.float32))
        y1_rows.append(jnp.concatenate(y_cols, axis=-1))   # (T, F)
    Y1 = y1_rows[0] if Bt == 1 else jnp.concatenate(y1_rows, axis=0)  # (N, F)

    # single fused (N,F)@(F,F) matmul with wy (F-wide contraction)
    Y2 = jnp.maximum(
        jnp.dot(Y1.astype(jnp.bfloat16), wy_ref[...],
                preferred_element_type=jnp.float32) + by_ref[0], 0.0)
    S = Y2 + xn
    F1 = lin_relu(S.astype(jnp.bfloat16), wf1_ref, bf1_ref)   # (N, k*F)
    F2 = lin_relu(F1.astype(jnp.bfloat16), wf2_ref, bf2_ref)  # (N, F)
    z_ref[...] = _layernorm(F2, gz_ref[0], bz_ref[0]).reshape(Bt, T, F)


def self_att_pallas(x, padding_mask, params, *, head_num, head_dim, block_b=1):
    B, T, F = x.shape
    H, D = head_num, head_dim
    assert H * D == F
    assert B % block_b == 0
    Bt = block_b

    # prefix (valid-length) representation of the padding mask -> SMEM prefetch
    valid_len = jnp.sum(padding_mask.astype(jnp.int32), axis=-1)   # (B,)

    bf16 = jnp.bfloat16
    qscale_tiled = jnp.tile(params["q_scale"], H).reshape(1, F).astype(jnp.float32)

    weights = [
        params["gx"], params["bx"],
        params["wk"].astype(bf16), params["bk"],
        params["wv"].astype(bf16), params["bv"],
        params["wq"].astype(bf16), params["bq"],
        qscale_tiled,
        params["wy"].astype(bf16), params["by"],
        params["wf1"].astype(bf16), params["bf1"],
        params["wf2"].astype(bf16), params["bf2"],
        params["gz"], params["bz"],
    ]

    def full_spec(a):
        nd = a.ndim
        return pl.BlockSpec(a.shape, lambda i, vl, _nd=nd: (0,) * _nd)

    btf_spec = lambda: pl.BlockSpec((Bt, T, F), lambda i, vl: (i, 0, 0))

    kernel = functools.partial(self_att_kernel, head_num=H, head_dim=D,
                               block_b=Bt, att_scale=float(math.sqrt(H)))

    grid_spec = pltpu.PrefetchScalarGridSpec(
        num_scalar_prefetch=1,
        grid=(B // Bt,),
        in_specs=[btf_spec()] + [full_spec(w) for w in weights],
        out_specs=(btf_spec(), btf_spec(), btf_spec(), btf_spec()),
    )

    out_shape = tuple(jax.ShapeDtypeStruct((B, T, F), jnp.float32)
                      for _ in range(4))

    Z, Qflat, Kflat, Vflat = pl.pallas_call(
        kernel,
        grid_spec=grid_spec,
        out_shape=out_shape,
        compiler_params=pltpu.CompilerParams(
            dimension_semantics=("parallel",),
            vmem_limit_bytes=64 * 1024 * 1024),
    )(valid_len, x, *weights)

    def split_heads(a):                      # (B,T,F) -> (B,H,T,D), matches torch permute
        return a.reshape(B, T, H, D).transpose(0, 2, 1, 3)

    return Z, split_heads(Qflat), split_heads(Kflat), split_heads(Vflat)


def init_params(key, F, H, D, k):
    ks = jax.random.split(key, 12)
    w = lambda kk, shape: 0.05 * jax.random.normal(kk, shape, jnp.float32)
    return dict(
        gx=jnp.ones((1, F), jnp.float32), bx=jnp.zeros((1, F), jnp.float32),
        wk=w(ks[0], (F, F)), bk=w(ks[1], (1, F)),
        wv=w(ks[2], (F, F)), bv=w(ks[3], (1, F)),
        wq=w(ks[4], (F, F)), bq=w(ks[5], (1, F)),
        q_scale=jnp.full((D,), 0.001, jnp.float32),      # ScaleLayer init_value
        wy=w(ks[6], (F, F)), by=w(ks[7], (1, F)),
        wf1=w(ks[8], (F, k * F)), bf1=w(ks[9], (1, k * F)),
        wf2=w(ks[10], (k * F, F)), bf2=w(ks[11], (1, F)),
        gz=jnp.ones((1, F), jnp.float32), bz=jnp.zeros((1, F), jnp.float32),
    )


def reference_forward(x, padding_mask, p, head_num, head_dim):
    def ln(v, g, b, eps=1e-5):
        mu = v.mean(-1, keepdims=True)
        var = ((v - mu) ** 2).mean(-1, keepdims=True)
        return (v - mu) / jnp.sqrt(var + eps) * g + b
    B, T, F = x.shape
    H, D = head_num, head_dim
    xn = ln(x, p["gx"], p["bx"])
    Kf = jax.nn.relu(xn @ p["wk"] + p["bk"])
    Vf = jax.nn.relu(xn @ p["wv"] + p["bv"])
    Q0 = jax.nn.relu(xn @ p["wq"] + p["bq"])
    Qf = Q0 * jnp.tile(p["q_scale"], H)
    split = lambda a: a.reshape(B, T, H, D).transpose(0, 2, 1, 3)
    Q, K, V = split(Qf), split(Kf), split(Vf)
    energy = jnp.einsum("bhqd,bhkd->bhqk", Q, K) / jnp.float32(math.sqrt(H))
    ok = padding_mask[:, None, :, None] & padding_mask[:, None, None, :]
    energy = jnp.where(ok, energy, -1e10)
    energy = energy - energy.max(-1, keepdims=True)
    pe = jnp.exp(energy)
    attn = pe / pe.sum(-1, keepdims=True)
    Y1 = jnp.einsum("bhqk,bhkd->bhqd", attn, V).transpose(0, 2, 1, 3).reshape(B, T, F)
    Y2 = jax.nn.relu(Y1 @ p["wy"] + p["by"])
    S = Y2 + xn
    F1 = jax.nn.relu(S @ p["wf1"] + p["bf1"])
    F2 = jax.nn.relu(F1 @ p["wf2"] + p["bf2"])
    Z = ln(F2, p["gz"], p["bz"])
    return Z, Q, K, V


if __name__ == "__main__":
    B, T, F, H, k = 2, 8, 32, 4, 4          # batch, time_steps, feature_dim, head_num, k
    D = F // H

    x = jax.random.normal(jax.random.PRNGKey(0), (B, T, F), jnp.float32)
    valid_len = jnp.array([T, T - 3])
    padding_mask = jnp.arange(T)[None, :] < valid_len[:, None]     # (B, T) bool
    params = init_params(jax.random.PRNGKey(42), F, H, D, k)

    # block_b=1 keeps Bt*T a multiple of 8 here and gives an even batch grid
    # (both v7x TensorCores get work).
    Z, Q, K, V = self_att_pallas(x, padding_mask, params,
                                 head_num=H, head_dim=D, block_b=1)
    jax.block_until_ready((Z, Q, K, V))

    Zr, Qr, Kr, Vr = reference_forward(x, padding_mask, params, H, D)
    for got, ref in ((Z, Zr), (Q, Qr), (K, Kr), (V, Vr)):
        assert got.shape == ref.shape
        assert jnp.allclose(got, ref, atol=3e-2, rtol=3e-2), \
            float(jnp.max(jnp.abs(got - ref)))

    print("KERNEL_OK")
</pallas_src>

<mosaic_0001>
module attributes {stable_mosaic.version = 11 : i64} {
  func.func @self_att_kernel(%arg0: i32, %arg1: memref<2xi32, #tpu.memory_space<smem>>, %arg2: memref<1x8x32xf32, #tpu.memory_space<vmem>>, %arg3: memref<1x32xf32, #tpu.memory_space<vmem>>, %arg4: memref<1x32xf32, #tpu.memory_space<vmem>>, %arg5: memref<32x32xbf16, #tpu.memory_space<vmem>>, %arg6: memref<1x32xf32, #tpu.memory_space<vmem>>, %arg7: memref<32x32xbf16, #tpu.memory_space<vmem>>, %arg8: memref<1x32xf32, #tpu.memory_space<vmem>>, %arg9: memref<32x32xbf16, #tpu.memory_space<vmem>>, %arg10: memref<1x32xf32, #tpu.memory_space<vmem>>, %arg11: memref<1x32xf32, #tpu.memory_space<vmem>>, %arg12: memref<32x32xbf16, #tpu.memory_space<vmem>>, %arg13: memref<1x32xf32, #tpu.memory_space<vmem>>, %arg14: memref<32x128xbf16, #tpu.memory_space<vmem>>, %arg15: memref<1x128xf32, #tpu.memory_space<vmem>>, %arg16: memref<128x32xbf16, #tpu.memory_space<vmem>>, %arg17: memref<1x32xf32, #tpu.memory_space<vmem>>, %arg18: memref<1x32xf32, #tpu.memory_space<vmem>>, %arg19: memref<1x32xf32, #tpu.memory_space<vmem>>, %arg20: memref<1x8x32xf32, #tpu.memory_space<vmem>>, %arg21: memref<1x8x32xf32, #tpu.memory_space<vmem>>, %arg22: memref<1x8x32xf32, #tpu.memory_space<vmem>>, %arg23: memref<1x8x32xf32, #tpu.memory_space<vmem>>) attributes {dimension_semantics = [#tpu.dimension_semantics<parallel>], iteration_bounds = array<i64: 2>, scalar_prefetch = 1 : i64, scratch_operands = 0 : i64, tpu.core_type = #tpu.core_type<tc>, window_params = [{transform_indices = @transform_0, window_bounds = array<i64: 1, 8, 32>}, {pipeline_mode = #tpu.pipeline_mode<synchronous>, transform_indices = @transform_1, window_bounds = array<i64: 1, 32>}, {pipeline_mode = #tpu.pipeline_mode<synchronous>, transform_indices = @transform_2, window_bounds = array<i64: 1, 32>}, {pipeline_mode = #tpu.pipeline_mode<synchronous>, transform_indices = @transform_3, window_bounds = array<i64: 32, 32>}, {pipeline_mode = #tpu.pipeline_mode<synchronous>, transform_indices = @transform_4, window_bounds = array<i64: 1, 32>}, {pipeline_mode = #tpu.pipeline_mode<synchronous>, transform_indices = @transform_5, window_bounds = array<i64: 32, 32>}, {pipeline_mode = #tpu.pipeline_mode<synchronous>, transform_indices = @transform_6, window_bounds = array<i64: 1, 32>}, {pipeline_mode = #tpu.pipeline_mode<synchronous>, transform_indices = @transform_7, window_bounds = array<i64: 32, 32>}, {pipeline_mode = #tpu.pipeline_mode<synchronous>, transform_indices = @transform_8, window_bounds = array<i64: 1, 32>}, {pipeline_mode = #tpu.pipeline_mode<synchronous>, transform_indices = @transform_9, window_bounds = array<i64: 1, 32>}, {pipeline_mode = #tpu.pipeline_mode<synchronous>, transform_indices = @transform_10, window_bounds = array<i64: 32, 32>}, {pipeline_mode = #tpu.pipeline_mode<synchronous>, transform_indices = @transform_11, window_bounds = array<i64: 1, 32>}, {pipeline_mode = #tpu.pipeline_mode<synchronous>, transform_indices = @transform_12, window_bounds = array<i64: 32, 128>}, {pipeline_mode = #tpu.pipeline_mode<synchronous>, transform_indices = @transform_13, window_bounds = array<i64: 1, 128>}, {pipeline_mode = #tpu.pipeline_mode<synchronous>, transform_indices = @transform_14, window_bounds = array<i64: 128, 32>}, {pipeline_mode = #tpu.pipeline_mode<synchronous>, transform_indices = @transform_15, window_bounds = array<i64: 1, 32>}, {pipeline_mode = #tpu.pipeline_mode<synchronous>, transform_indices = @transform_16, window_bounds = array<i64: 1, 32>}, {pipeline_mode = #tpu.pipeline_mode<synchronous>, transform_indices = @transform_17, window_bounds = array<i64: 1, 32>}, {transform_indices = @transform_18, window_bounds = array<i64: 1, 8, 32>}, {transform_indices = @transform_19, window_bounds = array<i64: 1, 8, 32>}, {transform_indices = @transform_20, window_bounds = array<i64: 1, 8, 32>}, {transform_indices = @transform_21, window_bounds = array<i64: 1, 8, 32>}]} {
    %c0 = arith.constant 0 : index
    %c0_0 = arith.constant 0 : index
    %c0_1 = arith.constant 0 : index
    %0 = vector.load %arg2[%c0, %c0_0, %c0_1] : memref<1x8x32xf32, #tpu.memory_space<vmem>>, vector<1x8x32xf32>
    %1 = vector.shape_cast %0 : vector<1x8x32xf32> to vector<8x32xf32>
    %c0_2 = arith.constant 0 : index
    %c0_3 = arith.constant 0 : index
    %2 = vector.load %arg3[%c0_2, %c0_3] : memref<1x32xf32, #tpu.memory_space<vmem>>, vector<1x32xf32>
    %3 = vector.shape_cast %2 : vector<1x32xf32> to vector<32xf32>
    %c0_4 = arith.constant 0 : index
    %c0_5 = arith.constant 0 : index
    %4 = vector.load %arg4[%c0_4, %c0_5] : memref<1x32xf32, #tpu.memory_space<vmem>>, vector<1x32xf32>
    %5 = vector.shape_cast %4 : vector<1x32xf32> to vector<32xf32>
    %cst = arith.constant dense<0.000000e+00> : vector<8xf32>
    %6 = vector.multi_reduction <add>, %1, %cst [1] : vector<8x32xf32> to vector<8xf32>
    %7 = vector.shape_cast %6 : vector<8xf32> to vector<8x1xf32>
    %cst_6 = arith.constant 3.200000e+01 : f32
    %8 = vector.broadcast %cst_6 : f32 to vector<8x1xf32>
    %9 = arith.divf %7, %8 : vector<8x1xf32>
    %10 = vector.broadcast %9 : vector<8x1xf32> to vector<8x32xf32>
    %11 = arith.subf %1, %10 : vector<8x32xf32>
    %12 = arith.mulf %11, %11 : vector<8x32xf32>
    %cst_7 = arith.constant dense<0.000000e+00> : vector<8xf32>
    %13 = vector.multi_reduction <add>, %12, %cst_7 [1] : vector<8x32xf32> to vector<8xf32>
    %14 = vector.shape_cast %13 : vector<8xf32> to vector<8x1xf32>
    %cst_8 = arith.constant 3.200000e+01 : f32
    %15 = vector.broadcast %cst_8 : f32 to vector<8x1xf32>
    %16 = arith.divf %14, %15 : vector<8x1xf32>
    %cst_9 = arith.constant 9.99999974E-6 : f32
    %17 = vector.broadcast %cst_9 : f32 to vector<8x1xf32>
    %18 = arith.addf %16, %17 : vector<8x1xf32>
    %19 = math.rsqrt %18 : vector<8x1xf32>
    %20 = vector.broadcast %19 : vector<8x1xf32> to vector<8x32xf32>
    %21 = arith.mulf %11, %20 : vector<8x32xf32>
    %22 = vector.shape_cast %3 : vector<32xf32> to vector<1x32xf32>
    %23 = vector.broadcast %22 : vector<1x32xf32> to vector<8x32xf32>
    %24 = arith.mulf %21, %23 : vector<8x32xf32>
    %25 = vector.shape_cast %5 : vector<32xf32> to vector<1x32xf32>
    %26 = vector.broadcast %25 : vector<1x32xf32> to vector<8x32xf32>
    %27 = arith.addf %24, %26 : vector<8x32xf32>
    %28 = arith.truncf %27 : vector<8x32xf32> to vector<8x32xbf16>
    %c0_10 = arith.constant 0 : index
    %c0_11 = arith.constant 0 : index
    %29 = vector.load %arg5[%c0_10, %c0_11] : memref<32x32xbf16, #tpu.memory_space<vmem>>, vector<32x32xbf16>
    %cst_12 = arith.constant dense<0.000000e+00> : vector<8x32xf32>
    %30 = tpu.matmul %28, %29, %cst_12 {dimension_numbers = #tpu.dot_dimension_numbers<[1], [0], [0], [1], [0, 0, 1, 1], [], []>} : vector<8x32xbf16>, vector<32x32xbf16>, vector<8x32xf32> -> vector<8x32xf32>
    %c0_13 = arith.constant 0 : index
    %c0_14 = arith.constant 0 : index
    %31 = vector.load %arg6[%c0_13, %c0_14] : memref<1x32xf32, #tpu.memory_space<vmem>>, vector<1x32xf32>
    %32 = vector.shape_cast %31 : vector<1x32xf32> to vector<32xf32>
    %33 = vector.shape_cast %32 : vector<32xf32> to vector<1x32xf32>
    %34 = vector.broadcast %33 : vector<1x32xf32> to vector<8x32xf32>
    %35 = arith.addf %30, %34 : vector<8x32xf32>
    %cst_15 = arith.constant 0.000000e+00 : f32
    %36 = vector.broadcast %cst_15 : f32 to vector<8x32xf32>
    %37 = arith.maximumf %35, %36 : vector<8x32xf32>
    %c0_16 = arith.constant 0 : index
    %c0_17 = arith.constant 0 : index
    %38 = vector.load %arg7[%c0_16, %c0_17] : memref<32x32xbf16, #tpu.memory_space<vmem>>, vector<32x32xbf16>
    %cst_18 = arith.constant dense<0.000000e+00> : vector<8x32xf32>
    %39 = tpu.matmul %28, %38, %cst_18 {dimension_numbers = #tpu.dot_dimension_numbers<[1], [0], [0], [1], [0, 0, 1, 1], [], []>} : vector<8x32xbf16>, vector<32x32xbf16>, vector<8x32xf32> -> vector<8x32xf32>
    %c0_19 = arith.constant 0 : index
    %c0_20 = arith.constant 0 : index
    %40 = vector.load %arg8[%c0_19, %c0_20] : memref<1x32xf32, #tpu.memory_space<vmem>>, vector<1x32xf32>
    %41 = vector.shape_cast %40 : vector<1x32xf32> to vector<32xf32>
    %42 = vector.shape_cast %41 : vector<32xf32> to vector<1x32xf32>
    %43 = vector.broadcast %42 : vector<1x32xf32> to vector<8x32xf32>
    %44 = arith.addf %39, %43 : vector<8x32xf32>
    %cst_21 = arith.constant 0.000000e+00 : f32
    %45 = vector.broadcast %cst_21 : f32 to vector<8x32xf32>
    %46 = arith.maximumf %44, %45 : vector<8x32xf32>
    %c0_22 = arith.constant 0 : index
    %c0_23 = arith.constant 0 : index
    %47 = vector.load %arg9[%c0_22, %c0_23] : memref<32x32xbf16, #tpu.memory_space<vmem>>, vector<32x32xbf16>
    %cst_24 = arith.constant dense<0.000000e+00> : vector<8x32xf32>
    %48 = tpu.matmul %28, %47, %cst_24 {dimension_numbers = #tpu.dot_dimension_numbers<[1], [0], [0], [1], [0, 0, 1, 1], [], []>} : vector<8x32xbf16>, vector<32x32xbf16>, vector<8x32xf32> -> vector<8x32xf32>
    %c0_25 = arith.constant 0 : index
    %c0_26 = arith.constant 0 : index
    %49 = vector.load %arg10[%c0_25, %c0_26] : memref<1x32xf32, #tpu.memory_space<vmem>>, vector<1x32xf32>
    %50 = vector.shape_cast %49 : vector<1x32xf32> to vector<32xf32>
    %51 = vector.shape_cast %50 : vector<32xf32> to vector<1x32xf32>
    %52 = vector.broadcast %51 : vector<1x32xf32> to vector<8x32xf32>
    %53 = arith.addf %48, %52 : vector<8x32xf32>
    %cst_27 = arith.constant 0.000000e+00 : f32
    %54 = vector.broadcast %cst_27 : f32 to vector<8x32xf32>
    %55 = arith.maximumf %53, %54 : vector<8x32xf32>
    %c0_28 = arith.constant 0 : index
    %c0_29 = arith.constant 0 : index
    %56 = vector.load %arg11[%c0_28, %c0_29] : memref<1x32xf32, #tpu.memory_space<vmem>>, vector<1x32xf32>
    %57 = vector.shape_cast %56 : vector<1x32xf32> to vector<32xf32>
    %58 = vector.shape_cast %57 : vector<32xf32> to vector<1x32xf32>
    %59 = vector.broadcast %58 : vector<1x32xf32> to vector<8x32xf32>
    %60 = arith.mulf %55, %59 : vector<8x32xf32>
    %61 = vector.shape_cast %60 : vector<8x32xf32> to vector<1x8x32xf32>
    %c0_30 = arith.constant 0 : index
    %c0_31 = arith.constant 0 : index
    %c0_32 = arith.constant 0 : index
    %62 = vector.load %arg21[%c0_30, %c0_31, %c0_32] : memref<1x8x32xf32, #tpu.memory_space<vmem>>, vector<1x8x32xf32>
    tpu.vector_store %arg21[%c0_30, %c0_31, %c0_32], %61 {strides = array<i32>} : memref<1x8x32xf32, #tpu.memory_space<vmem>>, vector<1x8x32xf32>,
    %63 = vector.shape_cast %37 : vector<8x32xf32> to vector<1x8x32xf32>
    %c0_33 = arith.constant 0 : index
    %c0_34 = arith.constant 0 : index
    %c0_35 = arith.constant 0 : index
    %64 = vector.load %arg22[%c0_33, %c0_34, %c0_35] : memref<1x8x32xf32, #tpu.memory_space<vmem>>, vector<1x8x32xf32>
    tpu.vector_store %arg22[%c0_33, %c0_34, %c0_35], %63 {strides = array<i32>} : memref<1x8x32xf32, #tpu.memory_space<vmem>>, vector<1x8x32xf32>,
    %65 = vector.shape_cast %46 : vector<8x32xf32> to vector<1x8x32xf32>
    %c0_36 = arith.constant 0 : index
    %c0_37 = arith.constant 0 : index
    %c0_38 = arith.constant 0 : index
    %66 = vector.load %arg23[%c0_36, %c0_37, %c0_38] : memref<1x8x32xf32, #tpu.memory_space<vmem>>, vector<1x8x32xf32>
    tpu.vector_store %arg23[%c0_36, %c0_37, %c0_38], %65 {strides = array<i32>} : memref<1x8x32xf32, #tpu.memory_space<vmem>>, vector<1x8x32xf32>,
    %67 = arith.truncf %60 : vector<8x32xf32> to vector<8x32xbf16>
    %68 = arith.truncf %37 : vector<8x32xf32> to vector<8x32xbf16>
    %69 = arith.truncf %46 : vector<8x32xf32> to vector<8x32xbf16>
    %70 = tpu.iota {dimensions = array<i32: 0>} : vector<8x8xi32>
    %71 = tpu.iota {dimensions = array<i32: 1>} : vector<8x8xi32>
    %c1_i32 = arith.constant 1 : i32
    %72 = arith.muli %arg0, %c1_i32 : i32
    %c0_i32 = arith.constant 0 : i32
    %73 = arith.addi %72, %c0_i32 : i32
    %74 = arith.index_cast %73 : i32 to index
    %75 = memref.load %arg1[%74] : memref<2xi32, #tpu.memory_space<smem>>
    %76 = vector.broadcast %75 : i32 to vector<8x8xi32>
    %77 = arith.cmpi slt, %70, %76 : vector<8x8xi32>
    %78 = vector.broadcast %75 : i32 to vector<8x8xi32>
    %79 = arith.cmpi slt, %71, %78 : vector<8x8xi32>
    %80 = arith.andi %77, %79 : vector<8x8xi1>
    %81 = vector.extract_strided_slice %67 {offsets = [0, 0], sizes = [8, 8], strides = [1, 1]} : vector<8x32xbf16> to vector<8x8xbf16>
    %82 = vector.extract_strided_slice %68 {offsets = [0, 0], sizes = [8, 8], strides = [1, 1]} : vector<8x32xbf16> to vector<8x8xbf16>
    %83 = vector.extract_strided_slice %69 {offsets = [0, 0], sizes = [8, 8], strides = [1, 1]} : vector<8x32xbf16> to vector<8x8xbf16>
    %cst_39 = arith.constant dense<0.000000e+00> : vector<8x8xf32>
    %84 = tpu.matmul %81, %82, %cst_39 {dimension_numbers = #tpu.dot_dimension_numbers<[1], [1], [0], [0], [0, 0, 1, 0], [], []>} : vector<8x8xbf16>, vector<8x8xbf16>, vector<8x8xf32> -> vector<8x8xf32>
    %cst_40 = arith.constant 5.000000e-01 : f32
    %85 = vector.broadcast %cst_40 : f32 to vector<8x8xf32>
    %86 = arith.mulf %84, %85 : vector<8x8xf32>
    %cst_41 = arith.constant -1.000000e+10 : f32
    %87 = vector.broadcast %cst_41 : f32 to vector<8x8xf32>
    %88 = arith.select %80, %86, %87 : vector<8x8xi1>, vector<8x8xf32>
    %cst_42 = arith.constant dense<0xFF800000> : vector<8xf32>
    %89 = vector.multi_reduction <maximumf>, %88, %cst_42 [1] : vector<8x8xf32> to vector<8xf32>
    %90 = vector.shape_cast %89 : vector<8xf32> to vector<8x1xf32>
    %91 = vector.broadcast %90 : vector<8x1xf32> to vector<8x8xf32>
    %92 = arith.subf %88, %91 : vector<8x8xf32>
    %93 = math.exp %92 : vector<8x8xf32>
    %cst_43 = arith.constant dense<0.000000e+00> : vector<8xf32>
    %94 = vector.multi_reduction <add>, %93, %cst_43 [1] : vector<8x8xf32> to vector<8xf32>
    %95 = vector.shape_cast %94 : vector<8xf32> to vector<8x1xf32>
    %96 = tpu.reciprocal %95 {approx = true} : vector<8x1xf32> -> vector<8x1xf32>
    %97 = vector.broadcast %96 : vector<8x1xf32> to vector<8x8xf32>
    %98 = arith.mulf %93, %97 : vector<8x8xf32>
    %99 = arith.truncf %98 : vector<8x8xf32> to vector<8x8xbf16>
    %cst_44 = arith.constant dense<0.000000e+00> : vector<8x8xf32>
    %100 = tpu.matmul %99, %83, %cst_44 {dimension_numbers = #tpu.dot_dimension_numbers<[1], [0], [0], [1], [0, 0, 1, 1], [], []>} : vector<8x8xbf16>, vector<8x8xbf16>, vector<8x8xf32> -> vector<8x8xf32>
    %101 = vector.extract_strided_slice %67 {offsets = [0, 8], sizes = [8, 8], strides = [1, 1]} : vector<8x32xbf16> to vector<8x8xbf16>
    %102 = vector.extract_strided_slice %68 {offsets = [0, 8], sizes = [8, 8], strides = [1, 1]} : vector<8x32xbf16> to vector<8x8xbf16>
    %103 = vector.extract_strided_slice %69 {offsets = [0, 8], sizes = [8, 8], strides = [1, 1]} : vector<8x32xbf16> to vector<8x8xbf16>
    %cst_45 = arith.constant dense<0.000000e+00> : vector<8x8xf32>
    %104 = tpu.matmul %101, %102, %cst_45 {dimension_numbers = #tpu.dot_dimension_numbers<[1], [1], [0], [0], [0, 0, 1, 0], [], []>} : vector<8x8xbf16>, vector<8x8xbf16>, vector<8x8xf32> -> vector<8x8xf32>
    %cst_46 = arith.constant 5.000000e-01 : f32
    %105 = vector.broadcast %cst_46 : f32 to vector<8x8xf32>
    %106 = arith.mulf %104, %105 : vector<8x8xf32>
    %cst_47 = arith.constant -1.000000e+10 : f32
    %107 = vector.broadcast %cst_47 : f32 to vector<8x8xf32>
    %108 = arith.select %80, %106, %107 : vector<8x8xi1>, vector<8x8xf32>
    %cst_48 = arith.constant dense<0xFF800000> : vector<8xf32>
    %109 = vector.multi_reduction <maximumf>, %108, %cst_48 [1] : vector<8x8xf32> to vector<8xf32>
    %110 = vector.shape_cast %109 : vector<8xf32> to vector<8x1xf32>
    %111 = vector.broadcast %110 : vector<8x1xf32> to vector<8x8xf32>
    %112 = arith.subf %108, %111 : vector<8x8xf32>
    %113 = math.exp %112 : vector<8x8xf32>
    %cst_49 = arith.constant dense<0.000000e+00> : vector<8xf32>
    %114 = vector.multi_reduction <add>, %113, %cst_49 [1] : vector<8x8xf32> to vector<8xf32>
    %115 = vector.shape_cast %114 : vector<8xf32> to vector<8x1xf32>
    %116 = tpu.reciprocal %115 {approx = true} : vector<8x1xf32> -> vector<8x1xf32>
    %117 = vector.broadcast %116 : vector<8x1xf32> to vector<8x8xf32>
    %118 = arith.mulf %113, %117 : vector<8x8xf32>
    %119 = arith.truncf %118 : vector<8x8xf32> to vector<8x8xbf16>
    %cst_50 = arith.constant dense<0.000000e+00> : vector<8x8xf32>
    %120 = tpu.matmul %119, %103, %cst_50 {dimension_numbers = #tpu.dot_dimension_numbers<[1], [0], [0], [1], [0, 0, 1, 1], [], []>} : vector<8x8xbf16>, vector<8x8xbf16>, vector<8x8xf32> -> vector<8x8xf32>
    %121 = vector.extract_strided_slice %67 {offsets = [0, 16], sizes = [8, 8], strides = [1, 1]} : vector<8x32xbf16> to vector<8x8xbf16>
    %122 = vector.extract_strided_slice %68 {offsets = [0, 16], sizes = [8, 8], strides = [1, 1]} : vector<8x32xbf16> to vector<8x8xbf16>
    %123 = vector.extract_strided_slice %69 {offsets = [0, 16], sizes = [8, 8], strides = [1, 1]} : vector<8x32xbf16> to vector<8x8xbf16>
    %cst_51 = arith.constant dense<0.000000e+00> : vector<8x8xf32>
    %124 = tpu.matmul %121, %122, %cst_51 {dimension_numbers = #tpu.dot_dimension_numbers<[1], [1], [0], [0], [0, 0, 1, 0], [], []>} : vector<8x8xbf16>, vector<8x8xbf16>, vector<8x8xf32> -> vector<8x8xf32>
    %cst_52 = arith.constant 5.000000e-01 : f32
    %125 = vector.broadcast %cst_52 : f32 to vector<8x8xf32>
    %126 = arith.mulf %124, %125 : vector<8x8xf32>
    %cst_53 = arith.constant -1.000000e+10 : f32
    %127 = vector.broadcast %cst_53 : f32 to vector<8x8xf32>
    %128 = arith.select %80, %126, %127 : vector<8x8xi1>, vector<8x8xf32>
    %cst_54 = arith.constant dense<0xFF800000> : vector<8xf32>
    %129 = vector.multi_reduction <maximumf>, %128, %cst_54 [1] : vector<8x8xf32> to vector<8xf32>
    %130 = vector.shape_cast %129 : vector<8xf32> to vector<8x1xf32>
    %131 = vector.broadcast %130 : vector<8x1xf32> to vector<8x8xf32>
    %132 = arith.subf %128, %131 : vector<8x8xf32>
    %133 = math.exp %132 : vector<8x8xf32>
    %cst_55 = arith.constant dense<0.000000e+00> : vector<8xf32>
    %134 = vector.multi_reduction <add>, %133, %cst_55 [1] : vector<8x8xf32> to vector<8xf32>
    %135 = vector.shape_cast %134 : vector<8xf32> to vector<8x1xf32>
    %136 = tpu.reciprocal %135 {approx = true} : vector<8x1xf32> -> vector<8x1xf32>
    %137 = vector.broadcast %136 : vector<8x1xf32> to vector<8x8xf32>
    %138 = arith.mulf %133, %137 : vector<8x8xf32>
    %139 = arith.truncf %138 : vector<8x8xf32> to vector<8x8xbf16>
    %cst_56 = arith.constant dense<0.000000e+00> : vector<8x8xf32>
    %140 = tpu.matmul %139, %123, %cst_56 {dimension_numbers = #tpu.dot_dimension_numbers<[1], [0], [0], [1], [0, 0, 1, 1], [], []>} : vector<8x8xbf16>, vector<8x8xbf16>, vector<8x8xf32> -> vector<8x8xf32>
    %141 = vector.extract_strided_slice %67 {offsets = [0, 24], sizes = [8, 8], strides = [1, 1]} : vector<8x32xbf16> to vector<8x8xbf16>
    %142 = vector.extract_strided_slice %68 {offsets = [0, 24], sizes = [8, 8], strides = [1, 1]} : vector<8x32xbf16> to vector<8x8xbf16>
    %143 = vector.extract_strided_slice %69 {offsets = [0, 24], sizes = [8, 8], strides = [1, 1]} : vector<8x32xbf16> to vector<8x8xbf16>
    %cst_57 = arith.constant dense<0.000000e+00> : vector<8x8xf32>
    %144 = tpu.matmul %141, %142, %cst_57 {dimension_numbers = #tpu.dot_dimension_numbers<[1], [1], [0], [0], [0, 0, 1, 0], [], []>} : vector<8x8xbf16>, vector<8x8xbf16>, vector<8x8xf32> -> vector<8x8xf32>
    %cst_58 = arith.constant 5.000000e-01 : f32
    %145 = vector.broadcast %cst_58 : f32 to vector<8x8xf32>
    %146 = arith.mulf %144, %145 : vector<8x8xf32>
    %cst_59 = arith.constant -1.000000e+10 : f32
    %147 = vector.broadcast %cst_59 : f32 to vector<8x8xf32>
    %148 = arith.select %80, %146, %147 : vector<8x8xi1>, vector<8x8xf32>
    %cst_60 = arith.constant dense<0xFF800000> : vector<8xf32>
    %149 = vector.multi_reduction <maximumf>, %148, %cst_60 [1] : vector<8x8xf32> to vector<8xf32>
    %150 = vector.shape_cast %149 : vector<8xf32> to vector<8x1xf32>
    %151 = vector.broadcast %150 : vector<8x1xf32> to vector<8x8xf32>
    %152 = arith.subf %148, %151 : vector<8x8xf32>
    %153 = math.exp %152 : vector<8x8xf32>
    %cst_61 = arith.constant dense<0.000000e+00> : vector<8xf32>
    %154 = vector.multi_reduction <add>, %153, %cst_61 [1] : vector<8x8xf32> to vector<8xf32>
    %155 = vector.shape_cast %154 : vector<8xf32> to vector<8x1xf32>
    %156 = tpu.reciprocal %155 {approx = true} : vector<8x1xf32> -> vector<8x1xf32>
    %157 = vector.broadcast %156 : vector<8x1xf32> to vector<8x8xf32>
    %158 = arith.mulf %153, %157 : vector<8x8xf32>
    %159 = arith.truncf %158 : vector<8x8xf32> to vector<8x8xbf16>
    %cst_62 = arith.constant dense<0.000000e+00> : vector<8x8xf32>
    %160 = tpu.matmul %159, %143, %cst_62 {dimension_numbers = #tpu.dot_dimension_numbers<[1], [0], [0], [1], [0, 0, 1, 1], [], []>} : vector<8x8xbf16>, vector<8x8xbf16>, vector<8x8xf32> -> vector<8x8xf32>
    %161 = tpu.concatenate %100, %120, %140, %160 in 1 : vector<8x8xf32>, vector<8x8xf32>, vector<8x8xf32>, vector<8x8xf32> -> vector<8x32xf32>
    %162 = arith.truncf %161 : vector<8x32xf32> to vector<8x32xbf16>
    %c0_63 = arith.constant 0 : index
    %c0_64 = arith.constant 0 : index
    %163 = vector.load %arg12[%c0_63, %c0_64] : memref<32x32xbf16, #tpu.memory_space<vmem>>, vector<32x32xbf16>
    %cst_65 = arith.constant dense<0.000000e+00> : vector<8x32xf32>
    %164 = tpu.matmul %162, %163, %cst_65 {dimension_numbers = #tpu.dot_dimension_numbers<[1], [0], [0], [1], [0, 0, 1, 1], [], []>} : vector<8x32xbf16>, vector<32x32xbf16>, vector<8x32xf32> -> vector<8x32xf32>
    %c0_66 = arith.constant 0 : index
    %c0_67 = arith.constant 0 : index
    %165 = vector.load %arg13[%c0_66, %c0_67] : memref<1x32xf32, #tpu.memory_space<vmem>>, vector<1x32xf32>
    %166 = vector.shape_cast %165 : vector<1x32xf32> to vector<32xf32>
    %167 = vector.shape_cast %166 : vector<32xf32> to vector<1x32xf32>
    %168 = vector.broadcast %167 : vector<1x32xf32> to vector<8x32xf32>
    %169 = arith.addf %164, %168 : vector<8x32xf32>
    %cst_68 = arith.constant 0.000000e+00 : f32
    %170 = vector.broadcast %cst_68 : f32 to vector<8x32xf32>
    %171 = arith.maximumf %169, %170 : vector<8x32xf32>
    %172 = arith.addf %171, %27 : vector<8x32xf32>
    %173 = arith.truncf %172 : vector<8x32xf32> to vector<8x32xbf16>
    %c0_69 = arith.constant 0 : index
    %c0_70 = arith.constant 0 : index
    %174 = vector.load %arg14[%c0_69, %c0_70] : memref<32x128xbf16, #tpu.memory_space<vmem>>, vector<32x128xbf16>
    %cst_71 = arith.constant dense<0.000000e+00> : vector<8x128xf32>
    %175 = tpu.matmul %173, %174, %cst_71 {dimension_numbers = #tpu.dot_dimension_numbers<[1], [0], [0], [1], [0, 0, 1, 1], [], []>} : vector<8x32xbf16>, vector<32x128xbf16>, vector<8x128xf32> -> vector<8x128xf32>
    %c0_72 = arith.constant 0 : index
    %c0_73 = arith.constant 0 : index
    %176 = vector.load %arg15[%c0_72, %c0_73] : memref<1x128xf32, #tpu.memory_space<vmem>>, vector<1x128xf32>
    %177 = vector.shape_cast %176 : vector<1x128xf32> to vector<128xf32>
    %178 = vector.shape_cast %177 : vector<128xf32> to vector<1x128xf32>
    %179 = vector.broadcast %178 : vector<1x128xf32> to vector<8x128xf32>
    %180 = arith.addf %175, %179 : vector<8x128xf32>
    %cst_74 = arith.constant 0.000000e+00 : f32
    %181 = vector.broadcast %cst_74 : f32 to vector<8x128xf32>
    %182 = arith.maximumf %180, %181 : vector<8x128xf32>
    %183 = arith.truncf %182 : vector<8x128xf32> to vector<8x128xbf16>
    %c0_75 = arith.constant 0 : index
    %c0_76 = arith.constant 0 : index
    %184 = vector.load %arg16[%c0_75, %c0_76] : memref<128x32xbf16, #tpu.memory_space<vmem>>, vector<128x32xbf16>
    %cst_77 = arith.constant dense<0.000000e+00> : vector<8x32xf32>
    %185 = tpu.matmul %183, %184, %cst_77 {dimension_numbers = #tpu.dot_dimension_numbers<[1], [0], [0], [1], [0, 0, 1, 1], [], []>} : vector<8x128xbf16>, vector<128x32xbf16>, vector<8x32xf32> -> vector<8x32xf32>
    %c0_78 = arith.constant 0 : index
    %c0_79 = arith.constant 0 : index
    %186 = vector.load %arg17[%c0_78, %c0_79] : memref<1x32xf32, #tpu.memory_space<vmem>>, vector<1x32xf32>
    %187 = vector.shape_cast %186 : vector<1x32xf32> to vector<32xf32>
    %188 = vector.shape_cast %187 : vector<32xf32> to vector<1x32xf32>
    %189 = vector.broadcast %188 : vector<1x32xf32> to vector<8x32xf32>
    %190 = arith.addf %185, %189 : vector<8x32xf32>
    %cst_80 = arith.constant 0.000000e+00 : f32
    %191 = vector.broadcast %cst_80 : f32 to vector<8x32xf32>
    %192 = arith.maximumf %190, %191 : vector<8x32xf32>
    %c0_81 = arith.constant 0 : index
    %c0_82 = arith.constant 0 : index
    %193 = vector.load %arg18[%c0_81, %c0_82] : memref<1x32xf32, #tpu.memory_space<vmem>>, vector<1x32xf32>
    %194 = vector.shape_cast %193 : vector<1x32xf32> to vector<32xf32>
    %c0_83 = arith.constant 0 : index
    %c0_84 = arith.constant 0 : index
    %195 = vector.load %arg19[%c0_83, %c0_84] : memref<1x32xf32, #tpu.memory_space<vmem>>, vector<1x32xf32>
    %196 = vector.shape_cast %195 : vector<1x32xf32> to vector<32xf32>
    %cst_85 = arith.constant dense<0.000000e+00> : vector<8xf32>
    %197 = vector.multi_reduction <add>, %192, %cst_85 [1] : vector<8x32xf32> to vector<8xf32>
    %198 = vector.shape_cast %197 : vector<8xf32> to vector<8x1xf32>
    %cst_86 = arith.constant 3.200000e+01 : f32
    %199 = vector.broadcast %cst_86 : f32 to vector<8x1xf32>
    %200 = arith.divf %198, %199 : vector<8x1xf32>
    %201 = vector.broadcast %200 : vector<8x1xf32> to vector<8x32xf32>
    %202 = arith.subf %192, %201 : vector<8x32xf32>
    %203 = arith.mulf %202, %202 : vector<8x32xf32>
    %cst_87 = arith.constant dense<0.000000e+00> : vector<8xf32>
    %204 = vector.multi_reduction <add>, %203, %cst_87 [1] : vector<8x32xf32> to vector<8xf32>
    %205 = vector.shape_cast %204 : vector<8xf32> to vector<8x1xf32>
    %cst_88 = arith.constant 3.200000e+01 : f32
    %206 = vector.broadcast %cst_88 : f32 to vector<8x1xf32>
    %207 = arith.divf %205, %206 : vector<8x1xf32>
    %cst_89 = arith.constant 9.99999974E-6 : f32
    %208 = vector.broadcast %cst_89 : f32 to vector<8x1xf32>
    %209 = arith.addf %207, %208 : vector<8x1xf32>
    %210 = math.rsqrt %209 : vector<8x1xf32>
    %211 = vector.broadcast %210 : vector<8x1xf32> to vector<8x32xf32>
    %212 = arith.mulf %202, %211 : vector<8x32xf32>
    %213 = vector.shape_cast %194 : vector<32xf32> to vector<1x32xf32>
    %214 = vector.broadcast %213 : vector<1x32xf32> to vector<8x32xf32>
    %215 = arith.mulf %212, %214 : vector<8x32xf32>
    %216 = vector.shape_cast %196 : vector<32xf32> to vector<1x32xf32>
    %217 = vector.broadcast %216 : vector<1x32xf32> to vector<8x32xf32>
    %218 = arith.addf %215, %217 : vector<8x32xf32>
    %219 = vector.shape_cast %218 : vector<8x32xf32> to vector<1x8x32xf32>
    %c0_90 = arith.constant 0 : index
    %c0_91 = arith.constant 0 : index
    %c0_92 = arith.constant 0 : index
    %220 = vector.load %arg20[%c0_90, %c0_91, %c0_92] : memref<1x8x32xf32, #tpu.memory_space<vmem>>, vector<1x8x32xf32>
    tpu.vector_store %arg20[%c0_90, %c0_91, %c0_92], %219 {strides = array<i32>} : memref<1x8x32xf32, #tpu.memory_space<vmem>>, vector<1x8x32xf32>,
    return
  }
  func.func @transform_0(%arg0: i32, %arg1: memref<2xi32, #tpu.memory_space<smem>>) -> (i32, i32, i32) {
    %c0_i32 = arith.constant 0 : i32
    %c0_i32_0 = arith.constant 0 : i32
    %c0_i32_1 = arith.constant 0 : i32
    return %arg0, %c0_i32, %c0_i32_0 : i32, i32, i32
  }
  func.func @transform_1(%arg0: i32, %arg1: memref<2xi32, #tpu.memory_space<smem>>) -> (i32, i32) {
    %c0_i32 = arith.constant 0 : i32
    %c0_i32_0 = arith.constant 0 : i32
    %c0_i32_1 = arith.constant 0 : i32
    return %c0_i32, %c0_i32_0 : i32, i32
  }
  func.func @transform_2(%arg0: i32, %arg1: memref<2xi32, #tpu.memory_space<smem>>) -> (i32, i32) {
    %c0_i32 = arith.constant 0 : i32
    %c0_i32_0 = arith.constant 0 : i32
    %c0_i32_1 = arith.constant 0 : i32
    return %c0_i32, %c0_i32_0 : i32, i32
  }
  func.func @transform_3(%arg0: i32, %arg1: memref<2xi32, #tpu.memory_space<smem>>) -> (i32, i32) {
    %c0_i32 = arith.constant 0 : i32
    %c0_i32_0 = arith.constant 0 : i32
    %c0_i32_1 = arith.constant 0 : i32
    return %c0_i32, %c0_i32_0 : i32, i32
  }
  func.func @transform_4(%arg0: i32, %arg1: memref<2xi32, #tpu.memory_space<smem>>) -> (i32, i32) {
    %c0_i32 = arith.constant 0 : i32
    %c0_i32_0 = arith.constant 0 : i32
    %c0_i32_1 = arith.constant 0 : i32
    return %c0_i32, %c0_i32_0 : i32, i32
  }
  func.func @transform_5(%arg0: i32, %arg1: memref<2xi32, #tpu.memory_space<smem>>) -> (i32, i32) {
    %c0_i32 = arith.constant 0 : i32
    %c0_i32_0 = arith.constant 0 : i32
    %c0_i32_1 = arith.constant 0 : i32
    return %c0_i32, %c0_i32_0 : i32, i32
  }
  func.func @transform_6(%arg0: i32, %arg1: memref<2xi32, #tpu.memory_space<smem>>) -> (i32, i32) {
    %c0_i32 = arith.constant 0 : i32
    %c0_i32_0 = arith.constant 0 : i32
    %c0_i32_1 = arith.constant 0 : i32
    return %c0_i32, %c0_i32_0 : i32, i32
  }
  func.func @transform_7(%arg0: i32, %arg1: memref<2xi32, #tpu.memory_space<smem>>) -> (i32, i32) {
    %c0_i32 = arith.constant 0 : i32
    %c0_i32_0 = arith.constant 0 : i32
    %c0_i32_1 = arith.constant 0 : i32
    return %c0_i32, %c0_i32_0 : i32, i32
  }
  func.func @transform_8(%arg0: i32, %arg1: memref<2xi32, #tpu.memory_space<smem>>) -> (i32, i32) {
    %c0_i32 = arith.constant 0 : i32
    %c0_i32_0 = arith.constant 0 : i32
    %c0_i32_1 = arith.constant 0 : i32
    return %c0_i32, %c0_i32_0 : i32, i32
  }
  func.func @transform_9(%arg0: i32, %arg1: memref<2xi32, #tpu.memory_space<smem>>) -> (i32, i32) {
    %c0_i32 = arith.constant 0 : i32
    %c0_i32_0 = arith.constant 0 : i32
    %c0_i32_1 = arith.constant 0 : i32
    return %c0_i32, %c0_i32_0 : i32, i32
  }
  func.func @transform_10(%arg0: i32, %arg1: memref<2xi32, #tpu.memory_space<smem>>) -> (i32, i32) {
    %c0_i32 = arith.constant 0 : i32
    %c0_i32_0 = arith.constant 0 : i32
    %c0_i32_1 = arith.constant 0 : i32
    return %c0_i32, %c0_i32_0 : i32, i32
  }
  func.func @transform_11(%arg0: i32, %arg1: memref<2xi32, #tpu.memory_space<smem>>) -> (i32, i32) {
    %c0_i32 = arith.constant 0 : i32
    %c0_i32_0 = arith.constant 0 : i32
    %c0_i32_1 = arith.constant 0 : i32
    return %c0_i32, %c0_i32_0 : i32, i32
  }
  func.func @transform_12(%arg0: i32, %arg1: memref<2xi32, #tpu.memory_space<smem>>) -> (i32, i32) {
    %c0_i32 = arith.constant 0 : i32
    %c0_i32_0 = arith.constant 0 : i32
    %c0_i32_1 = arith.constant 0 : i32
    return %c0_i32, %c0_i32_0 : i32, i32
  }
  func.func @transform_13(%arg0: i32, %arg1: memref<2xi32, #tpu.memory_space<smem>>) -> (i32, i32) {
    %c0_i32 = arith.constant 0 : i32
    %c0_i32_0 = arith.constant 0 : i32
    %c0_i32_1 = arith.constant 0 : i32
    return %c0_i32, %c0_i32_0 : i32, i32
  }
  func.func @transform_14(%arg0: i32, %arg1: memref<2xi32, #tpu.memory_space<smem>>) -> (i32, i32) {
    %c0_i32 = arith.constant 0 : i32
    %c0_i32_0 = arith.constant 0 : i32
    %c0_i32_1 = arith.constant 0 : i32
    return %c0_i32, %c0_i32_0 : i32, i32
  }
  func.func @transform_15(%arg0: i32, %arg1: memref<2xi32, #tpu.memory_space<smem>>) -> (i32, i32) {
    %c0_i32 = arith.constant 0 : i32
    %c0_i32_0 = arith.constant 0 : i32
    %c0_i32_1 = arith.constant 0 : i32
    return %c0_i32, %c0_i32_0 : i32, i32
  }
  func.func @transform_16(%arg0: i32, %arg1: memref<2xi32, #tpu.memory_space<smem>>) -> (i32, i32) {
    %c0_i32 = arith.constant 0 : i32
    %c0_i32_0 = arith.constant 0 : i32
    %c0_i32_1 = arith.constant 0 : i32
    return %c0_i32, %c0_i32_0 : i32, i32
  }
  func.func @transform_17(%arg0: i32, %arg1: memref<2xi32, #tpu.memory_space<smem>>) -> (i32, i32) {
    %c0_i32 = arith.constant 0 : i32
    %c0_i32_0 = arith.constant 0 : i32
    %c0_i32_1 = arith.constant 0 : i32
    return %c0_i32, %c0_i32_0 : i32, i32
  }
  func.func @transform_18(%arg0: i32, %arg1: memref<2xi32, #tpu.memory_space<smem>>) -> (i32, i32, i32) {
    %c0_i32 = arith.constant 0 : i32
    %c0_i32_0 = arith.constant 0 : i32
    %c0_i32_1 = arith.constant 0 : i32
    return %arg0, %c0_i32, %c0_i32_0 : i32, i32, i32
  }
  func.func @transform_19(%arg0: i32, %arg1: memref<2xi32, #tpu.memory_space<smem>>) -> (i32, i32, i32) {
    %c0_i32 = arith.constant 0 : i32
    %c0_i32_0 = arith.constant 0 : i32
    %c0_i32_1 = arith.constant 0 : i32
    return %arg0, %c0_i32, %c0_i32_0 : i32, i32, i32
  }
  func.func @transform_20(%arg0: i32, %arg1: memref<2xi32, #tpu.memory_space<smem>>) -> (i32, i32, i32) {
    %c0_i32 = arith.constant 0 : i32
    %c0_i32_0 = arith.constant 0 : i32
    %c0_i32_1 = arith.constant 0 : i32
    return %arg0, %c0_i32, %c0_i32_0 : i32, i32, i32
  }
  func.func @transform_21(%arg0: i32, %arg1: memref<2xi32, #tpu.memory_space<smem>>) -> (i32, i32, i32) {
    %c0_i32 = arith.constant 0 : i32
    %c0_i32_0 = arith.constant 0 : i32
    %c0_i32_1 = arith.constant 0 : i32
    return %arg0, %c0_i32, %c0_i32_0 : i32, i32, i32
  }
}

</mosaic_0001>

<llo_original>
// kernel: tpu_custom_call.1
$region0: #{tpu_custom_call.1}
  #allocation0 [shape = 'u32[]', space=smem, size = 0x4, offset = 0x4, fixed_abs, tag = 'smem constant byte address 0x4 - core index']
  #allocation1 [shape = 'u32[144,128]{1,0:T(1,128)}', space=vmem, size = 0x12000, scoped, tag = 'internal scratch']
  #allocation2 [shape = 's32[1]{0}', space=sflag, size = 0x4, scoped, tag = 'scoped memory for tpu_custom_call.1']
  #allocation3 [shape = 'u8[512]{0}', space=smem, size = 0x200, scoped, tag = 'prefetched SMEM operand 0']
  %s0 = inlined_call_operand.hbm [shape: s32[2], index: 0, kind: input, shape index: {}]
  %s1 = inlined_call_operand.hbm [shape: f32[2,8,32], index: 1, kind: input, shape index: {}]
  %s2 = inlined_call_operand.hbm [shape: f32[1,32], index: 2, kind: input, shape index: {}]
  %s3 = inlined_call_operand.hbm [shape: f32[1,32], index: 3, kind: input, shape index: {}]
  %s4 = inlined_call_operand.hbm [shape: bf16[32,32], index: 4, kind: input, shape index: {}]
  %s5 = inlined_call_operand.hbm [shape: f32[1,32], index: 5, kind: input, shape index: {}]
  %s6 = inlined_call_operand.hbm [shape: bf16[32,32], index: 6, kind: input, shape index: {}]
  %s7 = inlined_call_operand.hbm [shape: f32[1,32], index: 7, kind: input, shape index: {}]
  %s8 = inlined_call_operand.hbm [shape: bf16[32,32], index: 8, kind: input, shape index: {}]
  %s9 = inlined_call_operand.hbm [shape: f32[1,32], index: 9, kind: input, shape index: {}]
  %s10 = inlined_call_operand.hbm [shape: f32[1,32], index: 10, kind: input, shape index: {}]
  %s11 = inlined_call_operand.hbm [shape: bf16[32,32], index: 11, kind: input, shape index: {}]
  %s12 = inlined_call_operand.hbm [shape: f32[1,32], index: 12, kind: input, shape index: {}]
  %s13 = inlined_call_operand.hbm [shape: bf16[32,128], index: 13, kind: input, shape index: {}]
  %s14 = inlined_call_operand.hbm [shape: f32[1,128], index: 14, kind: input, shape index: {}]
  %s15 = inlined_call_operand.hbm [shape: bf16[128,32], index: 15, kind: input, shape index: {}]
  %s16 = inlined_call_operand.hbm [shape: f32[1,32], index: 16, kind: input, shape index: {}]
  %s17 = inlined_call_operand.hbm [shape: f32[1,32], index: 17, kind: input, shape index: {}]
  %s18 = inlined_call_operand.hbm [shape: f32[1,32], index: 18, kind: input, shape index: {}]
  %s19 = inlined_call_operand.hbm [shape: f32[2,8,32], index: 19, kind: output, shape index: {0}]
  %s20 = inlined_call_operand.hbm [shape: f32[2,8,32], index: 20, kind: output, shape index: {1}]
  %s21 = inlined_call_operand.hbm [shape: f32[2,8,32], index: 21, kind: output, shape index: {2}]
  %s22 = inlined_call_operand.hbm [shape: f32[2,8,32], index: 22, kind: output, shape index: {3}]
  %23 = xla_tuple %s19, %s20, %s21, %s22
  %s24 = sld [smem:[#allocation0]]
  $region201: #{tpu_custom_call.1} parent=0
    _
  %s26 = ssub.s32 1, %s24
  %s27 = scalar_select 0, %s26, %s24
  %29 = dma.hbm_to_smem %s0, 16, [#allocation3], [#allocation2]
  %30 = dma.done [#allocation2], 16
  %31 = sfence
  $region1: #{tpu_custom_call.1} parent=0
    #allocation4 [shape = 'u8[8192]{0}', space=vmem, size = 0x2000, scoped, tag = 'input window, operand 1']
    #allocation5 [shape = 's32[2]{0}', space=sflag, size = 0x8, scoped, tag = 'scoped memory for tpu_custom_call.1']
    #allocation6 [shape = 's32[2]{0}', space=sflag, size = 0x8, scoped, tag = 'scoped memory for tpu_custom_call.1']
    #allocation7 [shape = 'u8[512]{0}', space=vmem, size = 0x400, scoped, tag = 'input window, operand 2, single buffered']
    #allocation8 [shape = 's32[1]{0}', space=sflag, size = 0x4, scoped, tag = 'scoped memory for tpu_custom_call.1']
    #allocation9 [shape = 'u8[512]{0}', space=vmem, size = 0x400, scoped, tag = 'input window, operand 3, single buffered']
    #allocation10 [shape = 'u8[8192]{0}', space=vmem, size = 0x2000, scoped, tag = 'input window, operand 4, single buffered']
    #allocation11 [shape = 's32[1]{0}', space=sflag, size = 0x4, scoped, tag = 'scoped memory for tpu_custom_call.1']
    #allocation12 [shape = 'u8[512]{0}', space=vmem, size = 0x400, scoped, tag = 'input window, operand 5, single buffered']
    #allocation13 [shape = 'u8[8192]{0}', space=vmem, size = 0x2000, scoped, tag = 'input window, operand 6, single buffered']
    #allocation14 [shape = 's32[1]{0}', space=sflag, size = 0x4, scoped, tag = 'scoped memory for tpu_custom_call.1']
    #allocation15 [shape = 'u8[512]{0}', space=vmem, size = 0x400, scoped, tag = 'input window, operand 7, single buffered']
    #allocation16 [shape = 'u8[8192]{0}', space=vmem, size = 0x2000, scoped, tag = 'input window, operand 8, single buffered']
    #allocation17 [shape = 's32[1]{0}', space=sflag, size = 0x4, scoped, tag = 'scoped memory for tpu_custom_call.1']
    #allocation18 [shape = 'u8[512]{0}', space=vmem, size = 0x400, scoped, tag = 'input window, operand 9, single buffered']
    #allocation19 [shape = 'u8[512]{0}', space=vmem, size = 0x400, scoped, tag = 'input window, operand 10, single buffered']
    #allocation20 [shape = 's32[1]{0}', space=sflag, size = 0x4, scoped, tag = 'scoped memory for tpu_custom_call.1']
    #allocation21 [shape = 'u8[8192]{0}', space=vmem, size = 0x2000, scoped, tag = 'input window, operand 11, single buffered']
    #allocation22 [shape = 'u8[512]{0}', space=vmem, size = 0x400, scoped, tag = 'input window, operand 12, single buffered']
    #allocation23 [shape = 's32[1]{0}', space=sflag, size = 0x4, scoped, tag = 'scoped memory for tpu_custom_call.1']
    #allocation24 [shape = 'u8[8192]{0}', space=vmem, size = 0x2000, scoped, tag = 'input window, operand 13, single buffered']
    #allocation25 [shape = 'u8[512]{0}', space=vmem, size = 0x400, scoped, tag = 'input window, operand 14, single buffered']
    #allocation26 [shape = 's32[1]{0}', space=sflag, size = 0x4, scoped, tag = 'scoped memory for tpu_custom_call.1']
    #allocation27 [shape = 'u8[32768]{0}', space=vmem, size = 0x8000, scoped, tag = 'input window, operand 15, single buffered']
    #allocation28 [shape = 'u8[512]{0}', space=vmem, size = 0x400, scoped, tag = 'input window, operand 16, single buffered']
    #allocation29 [shape = 's32[1]{0}', space=sflag, size = 0x4, scoped, tag = 'scoped memory for tpu_custom_call.1']
    #allocation30 [shape = 'u8[512]{0}', space=vmem, size = 0x400, scoped, tag = 'input window, operand 17, single buffered']
    #allocation31 [shape = 'u8[512]{0}', space=vmem, size = 0x400, scoped, tag = 'input window, operand 18, single buffered']
    #allocation32 [shape = 's32[1]{0}', space=sflag, size = 0x4, scoped, tag = 'scoped memory for tpu_custom_call.1']
    #allocation33 [shape = 'u8[8192]{0}', space=vmem, size = 0x2000, scoped, tag = 'output window, operand 0']
    #allocation34 [shape = 'u8[8192]{0}', space=vmem, size = 0x2000, scoped, tag = 'output window, operand 1']
    #allocation35 [shape = 's32[2]{0}', space=sflag, size = 0x8, scoped, tag = 'scoped memory for tpu_custom_call.1']
    #allocation36 [shape = 'u8[8192]{0}', space=vmem, size = 0x2000, scoped, tag = 'output window, operand 2']
    #allocation37 [shape = 'u8[8192]{0}', space=vmem, size = 0x2000, scoped, tag = 'output window, operand 3']
    #allocation38 [shape = 's32[2]{0}', space=sflag, size = 0x8, scoped, tag = 'scoped memory for tpu_custom_call.1']
    %32 = vsyncpa [#allocation5], 0
    %s33 = scalar_lea.sflag [#allocation5], 1
    %34 = vsyncpa %s33, 0
    %35 = vsyncpa [#allocation8], 0
    %36 = vsyncpa [#allocation11], 0
    %37 = vsyncpa [#allocation14], 0
    %38 = vsyncpa [#allocation17], 0
    %39 = vsyncpa [#allocation20], 0
    %40 = vsyncpa [#allocation23], 0
    %41 = vsyncpa [#allocation26], 0
    %42 = vsyncpa [#allocation29], 0
    %43 = vsyncpa [#allocation32], 0
    %44 = vsyncpa [#allocation6], 0
    %s45 = scalar_lea.sflag [#allocation6], 1
    %46 = vsyncpa %s45, 0
    %47 = vsyncpa [#allocation35], 0
    %s48 = scalar_lea.sflag [#allocation35], 1
    %49 = vsyncpa %s48, 0
    %50 = vsyncpa [#allocation38], 0
    %s51 = scalar_lea.sflag [#allocation38], 1
    %52 = vsyncpa %s51, 0
    loop: start=0, step=1, limit=4
    $region2: #{tpu_custom_call.1} parent=1 // loop_pre_header
      _
    $region3: #{tpu_custom_call.1} parent=1 // loop_header
      %s54 = sphi 0, %s58
      %p55 = scmp.ge.s32.totalorder %s54, 4
      %s64 = sphi 0, %s66
      %s67 = sphi 0, %s64
      %s68 = sphi 0, %s67
      %s84 = sphi 0, %s68
      %s88 = sphi 0, %s88
      %s90 = sphi 0, %s88
      %s91 = sphi 0, %s90
      %s105 = sphi 0, %s91
      %s109 = sphi 0, %s109
      %s111 = sphi 0, %s109
      %s112 = sphi 0, %s111
      %s126 = sphi 0, %s112
      %s130 = sphi 0, %s130
      %s132 = sphi 0, %s130
      %s133 = sphi 0, %s132
      %s147 = sphi 0, %s133
      %s151 = sphi 0, %s151
      %s153 = sphi 0, %s151
      %s154 = sphi 0, %s153
      %s168 = sphi 0, %s154
      %s172 = sphi 0, %s172
      %s174 = sphi 0, %s172
      %s175 = sphi 0, %s174
      %s189 = sphi 0, %s175
      %s193 = sphi 0, %s193
      %s195 = sphi 0, %s193
      %s196 = sphi 0, %s195
      %s210 = sphi 0, %s196
      %s214 = sphi 0, %s214
      %s216 = sphi 0, %s214
      %s217 = sphi 0, %s216
      %s231 = sphi 0, %s217
      %s235 = sphi 0, %s235
      %s237 = sphi 0, %s235
      %s238 = sphi 0, %s237
      %s252 = sphi 0, %s238
      %s256 = sphi 0, %s256
      %s258 = sphi 0, %s256
      %s259 = sphi 0, %s258
      %s273 = sphi 0, %s259
      %s277 = sphi 0, %s277
      %s279 = sphi 0, %s277
      %s280 = sphi 0, %s279
      %s294 = sphi 0, %s280
      %s298 = sphi 0, %s298
      %s300 = sphi 0, %s298
      %s301 = sphi 0, %s300
      %s315 = sphi 0, %s301
      %s319 = sphi 0, %s319
      %s321 = sphi 0, %s319
      %s322 = sphi 0, %s321
      %s336 = sphi 0, %s322
      %s340 = sphi 0, %s340
      %s342 = sphi 0, %s340
      %s343 = sphi 0, %s342
      %s357 = sphi 0, %s343
      %s361 = sphi 0, %s361
      %s363 = sphi 0, %s361
      %s364 = sphi 0, %s363
      %s378 = sphi 0, %s364
      %s382 = sphi 0, %s382
      %s384 = sphi 0, %s382
      %s385 = sphi 0, %s384
      %s399 = sphi 0, %s385
      %s403 = sphi 0, %s403
      %s405 = sphi 0, %s403
      %s406 = sphi 0, %s405
      %s420 = sphi 0, %s406
      %s424 = sphi 0, %s424
      %s426 = sphi 0, %s424
      %s427 = sphi 0, %s426
      %s441 = sphi 0, %s427
      %s447 = sphi 0, %s449
      %s450 = sphi 0, %s447
      %s451 = sphi 0, %s450
      %s467 = sphi 0, %s451
      %s473 = sphi 0, %s475
      %s476 = sphi 0, %s473
      %s477 = sphi 0, %s476
      %s493 = sphi 0, %s477
      %s499 = sphi 0, %s501
      %s502 = sphi 0, %s499
      %s503 = sphi 0, %s502
      %s519 = sphi 0, %s503
      %s525 = sphi 0, %s527
      %s528 = sphi 0, %s525
      %s529 = sphi 0, %s528
      %s545 = sphi 0, %s529
    $region4: #{tpu_custom_call.1} parent=1 // loop_header_branch
      %57 = sbr.rel (%p55) target = $region8
    $region5: #{tpu_custom_call.1} parent=1 // loop_body
      %s59 = ssub.s32 %s54, 1
      %s60 = ssub.s32 %s54, 2
      %s61 = sadd.s32 %s54, 1
      %s62 = ssub.s32 %s54, %s61
      %p63 = scmp.eq.s32.totalorder %s62, 0
      %s65 = sadd.s32 %s64, 1
      %s66 = scalar_select %p63, %s64, %s65
      %p69 = pneg %p63
      %p70 = scmp.eq.s32.totalorder %s54, 1
      %p71 = por %p69, %p70
      %p72 = scmp.ne.s32.totalorder %s64, %s67
      %p73 = scmp.eq.s32.totalorder %s54, 0
      %p74 = por %p72, %p73
      %p75 = scmp.ne.s32.totalorder %s64, %s67
      %p76 = scmp.eq.s32.totalorder %s59, 1
      %p77 = por %p75, %p76
      %p78 = scmp.ne.s32.totalorder %s67, %s68
      %p79 = scmp.eq.s32.totalorder %s59, 0
      %p80 = por %p78, %p79
      %p81 = scmp.ne.s32.totalorder %s67, %s68
      %p82 = scmp.eq.s32.totalorder %s60, 1
      %p83 = por %p81, %p82
      %p85 = scmp.ne.s32.totalorder %s68, %s84
      %p86 = scmp.eq.s32.totalorder %s60, 0
      %p87 = por %p85, %p86
      %s89 = sadd.s32 %s88, 1
      %p92 = scmp.eq.s32.totalorder %s54, 1
      %p93 = scmp.ne.s32.totalorder %s88, %s90
      %p94 = scmp.eq.s32.totalorder %s54, 0
      %p95 = por %p93, %p94
      %p96 = scmp.ne.s32.totalorder %s88, %s90
      %p97 = scmp.eq.s32.totalorder %s59, 1
      %p98 = por %p96, %p97
      %p99 = scmp.ne.s32.totalorder %s90, %s91
      %p100 = scmp.eq.s32.totalorder %s59, 0
      %p101 = por %p99, %p100
      %p102 = scmp.ne.s32.totalorder %s90, %s91
      %p103 = scmp.eq.s32.totalorder %s60, 1
      %p104 = por %p102, %p103
      %p106 = scmp.ne.s32.totalorder %s91, %s105
      %p107 = scmp.eq.s32.totalorder %s60, 0
      %p108 = por %p106, %p107
      %s110 = sadd.s32 %s109, 1
      %p113 = scmp.eq.s32.totalorder %s54, 1
      %p114 = scmp.ne.s32.totalorder %s109, %s111
      %p115 = scmp.eq.s32.totalorder %s54, 0
      %p116 = por %p114, %p115
      %p117 = scmp.ne.s32.totalorder %s109, %s111
      %p118 = scmp.eq.s32.totalorder %s59, 1
      %p119 = por %p117, %p118
      %p120 = scmp.ne.s32.totalorder %s111, %s112
      %p121 = scmp.eq.s32.totalorder %s59, 0
      %p122 = por %p120, %p121
      %p123 = scmp.ne.s32.totalorder %s111, %s112
      %p124 = scmp.eq.s32.totalorder %s60, 1
      %p125 = por %p123, %p124
      %p127 = scmp.ne.s32.totalorder %s112, %s126
      %p128 = scmp.eq.s32.totalorder %s60, 0
      %p129 = por %p127, %p128
      %s131 = sadd.s32 %s130, 1
      %p134 = scmp.eq.s32.totalorder %s54, 1
      %p135 = scmp.ne.s32.totalorder %s130, %s132
      %p136 = scmp.eq.s32.totalorder %s54, 0
      %p137 = por %p135, %p136
      %p138 = scmp.ne.s32.totalorder %s130, %s132
      %p139 = scmp.eq.s32.totalorder %s59, 1
      %p140 = por %p138, %p139
      %p141 = scmp.ne.s32.totalorder %s132, %s133
      %p142 = scmp.eq.s32.totalorder %s59, 0
      %p143 = por %p141, %p142
      %p144 = scmp.ne.s32.totalorder %s132, %s133
      %p145 = scmp.eq.s32.totalorder %s60, 1
      %p146 = por %p144, %p145
      %p148 = scmp.ne.s32.totalorder %s133, %s147
      %p149 = scmp.eq.s32.totalorder %s60, 0
      %p150 = por %p148, %p149
      %s152 = sadd.s32 %s151, 1
      %p155 = scmp.eq.s32.totalorder %s54, 1
      %p156 = scmp.ne.s32.totalorder %s151, %s153
      %p157 = scmp.eq.s32.totalorder %s54, 0
      %p158 = por %p156, %p157
      %p159 = scmp.ne.s32.totalorder %s151, %s153
      %p160 = scmp.eq.s32.totalorder %s59, 1
      %p161 = por %p159, %p160
      %p162 = scmp.ne.s32.totalorder %s153, %s154
      %p163 = scmp.eq.s32.totalorder %s59, 0
      %p164 = por %p162, %p163
      %p165 = scmp.ne.s32.totalorder %s153, %s154
      %p166 = scmp.eq.s32.totalorder %s60, 1
      %p167 = por %p165, %p166
      %p169 = scmp.ne.s32.totalorder %s154, %s168
      %p170 = scmp.eq.s32.totalorder %s60, 0
      %p171 = por %p169, %p170
      %s173 = sadd.s32 %s172, 1
      %p176 = scmp.eq.s32.totalorder %s54, 1
      %p177 = scmp.ne.s32.totalorder %s172, %s174
      %p178 = scmp.eq.s32.totalorder %s54, 0
      %p179 = por %p177, %p178
      %p180 = scmp.ne.s32.totalorder %s172, %s174
      %p181 = scmp.eq.s32.totalorder %s59, 1
      %p182 = por %p180, %p181
      %p183 = scmp.ne.s32.totalorder %s174, %s175
      %p184 = scmp.eq.s32.totalorder %s59, 0
      %p185 = por %p183, %p184
      %p186 = scmp.ne.s32.totalorder %s174, %s175
      %p187 = scmp.eq.s32.totalorder %s60, 1
      %p188 = por %p186, %p187
      %p190 = scmp.ne.s32.totalorder %s175, %s189
      %p191 = scmp.eq.s32.totalorder %s60, 0
      %p192 = por %p190, %p191
      %s194 = sadd.s32 %s193, 1
      %p197 = scmp.eq.s32.totalorder %s54, 1
      %p198 = scmp.ne.s32.totalorder %s193, %s195
      %p199 = scmp.eq.s32.totalorder %s54, 0
      %p200 = por %p198, %p199
      %p201 = scmp.ne.s32.totalorder %s193, %s195
      %p202 = scmp.eq.s32.totalorder %s59, 1
      %p203 = por %p201, %p202
      %p204 = scmp.ne.s32.totalorder %s195, %s196
      %p205 = scmp.eq.s32.totalorder %s59, 0
      %p206 = por %p204, %p205
      %p207 = scmp.ne.s32.totalorder %s195, %s196
      %p208 = scmp.eq.s32.totalorder %s60, 1
      %p209 = por %p207, %p208
      %p211 = scmp.ne.s32.totalorder %s196, %s210
      %p212 = scmp.eq.s32.totalorder %s60, 0
      %p213 = por %p211, %p212
      %s215 = sadd.s32 %s214, 1
      %p218 = scmp.eq.s32.totalorder %s54, 1
      %p219 = scmp.ne.s32.totalorder %s214, %s216
      %p220 = scmp.eq.s32.totalorder %s54, 0
      %p221 = por %p219, %p220
      %p222 = scmp.ne.s32.totalorder %s214, %s216
      %p223 = scmp.eq.s32.totalorder %s59, 1
      %p224 = por %p222, %p223
      %p225 = scmp.ne.s32.totalorder %s216, %s217
      %p226 = scmp.eq.s32.totalorder %s59, 0
      %p227 = por %p225, %p226
      %p228 = scmp.ne.s32.totalorder %s216, %s217
      %p229 = scmp.eq.s32.totalorder %s60, 1
      %p230 = por %p228, %p229
      %p232 = scmp.ne.s32.totalorder %s217, %s231
      %p233 = scmp.eq.s32.totalorder %s60, 0
      %p234 = por %p232, %p233
      %s236 = sadd.s32 %s235, 1
      %p239 = scmp.eq.s32.totalorder %s54, 1
      %p240 = scmp.ne.s32.totalorder %s235, %s237
      %p241 = scmp.eq.s32.totalorder %s54, 0
      %p242 = por %p240, %p241
      %p243 = scmp.ne.s32.totalorder %s235, %s237
      %p244 = scmp.eq.s32.totalorder %s59, 1
      %p245 = por %p243, %p244
      %p246 = scmp.ne.s32.totalorder %s237, %s238
      %p247 = scmp.eq.s32.totalorder %s59, 0
      %p248 = por %p246, %p247
      %p249 = scmp.ne.s32.totalorder %s237, %s238
      %p250 = scmp.eq.s32.totalorder %s60, 1
      %p251 = por %p249, %p250
      %p253 = scmp.ne.s32.totalorder %s238, %s252
      %p254 = scmp.eq.s32.totalorder %s60, 0
      %p255 = por %p253, %p254
      %s257 = sadd.s32 %s256, 1
      %p260 = scmp.eq.s32.totalorder %s54, 1
      %p261 = scmp.ne.s32.totalorder %s256, %s258
      %p262 = scmp.eq.s32.totalorder %s54, 0
      %p263 = por %p261, %p262
      %p264 = scmp.ne.s32.totalorder %s256, %s258
      %p265 = scmp.eq.s32.totalorder %s59, 1
      %p266 = por %p264, %p265
      %p267 = scmp.ne.s32.totalorder %s258, %s259
      %p268 = scmp.eq.s32.totalorder %s59, 0
      %p269 = por %p267, %p268
      %p270 = scmp.ne.s32.totalorder %s258, %s259
      %p271 = scmp.eq.s32.totalorder %s60, 1
      %p272 = por %p270, %p271
      %p274 = scmp.ne.s32.totalorder %s259, %s273
      %p275 = scmp.eq.s32.totalorder %s60, 0
      %p276 = por %p274, %p275
      %s278 = sadd.s32 %s277, 1
      %p281 = scmp.eq.s32.totalorder %s54, 1
      %p282 = scmp.ne.s32.totalorder %s277, %s279
      %p283 = scmp.eq.s32.totalorder %s54, 0
      %p284 = por %p282, %p283
      %p285 = scmp.ne.s32.totalorder %s277, %s279
      %p286 = scmp.eq.s32.totalorder %s59, 1
      %p287 = por %p285, %p286
      %p288 = scmp.ne.s32.totalorder %s279, %s280
      %p289 = scmp.eq.s32.totalorder %s59, 0
      %p290 = por %p288, %p289
      %p291 = scmp.ne.s32.totalorder %s279, %s280
      %p292 = scmp.eq.s32.totalorder %s60, 1
      %p293 = por %p291, %p292
      %p295 = scmp.ne.s32.totalorder %s280, %s294
      %p296 = scmp.eq.s32.totalorder %s60, 0
      %p297 = por %p295, %p296
      %s299 = sadd.s32 %s298, 1
      %p302 = scmp.eq.s32.totalorder %s54, 1
      %p303 = scmp.ne.s32.totalorder %s298, %s300
      %p304 = scmp.eq.s32.totalorder %s54, 0
      %p305 = por %p303, %p304
      %p306 = scmp.ne.s32.totalorder %s298, %s300
      %p307 = scmp.eq.s32.totalorder %s59, 1
      %p308 = por %p306, %p307
      %p309 = scmp.ne.s32.totalorder %s300, %s301
      %p310 = scmp.eq.s32.totalorder %s59, 0
      %p311 = por %p309, %p310
      %p312 = scmp.ne.s32.totalorder %s300, %s301
      %p313 = scmp.eq.s32.totalorder %s60, 1
      %p314 = por %p312, %p313
      %p316 = scmp.ne.s32.totalorder %s301, %s315
      %p317 = scmp.eq.s32.totalorder %s60, 0
      %p318 = por %p316, %p317
      %s320 = sadd.s32 %s319, 1
      %p323 = scmp.eq.s32.totalorder %s54, 1
      %p324 = scmp.ne.s32.totalorder %s319, %s321
      %p325 = scmp.eq.s32.totalorder %s54, 0
      %p326 = por %p324, %p325
      %p327 = scmp.ne.s32.totalorder %s319, %s321
      %p328 = scmp.eq.s32.totalorder %s59, 1
      %p329 = por %p327, %p328
      %p330 = scmp.ne.s32.totalorder %s321, %s322
      %p331 = scmp.eq.s32.totalorder %s59, 0
      %p332 = por %p330, %p331
      %p333 = scmp.ne.s32.totalorder %s321, %s322
      %p334 = scmp.eq.s32.totalorder %s60, 1
      %p335 = por %p333, %p334
      %p337 = scmp.ne.s32.totalorder %s322, %s336
      %p338 = scmp.eq.s32.totalorder %s60, 0
      %p339 = por %p337, %p338
      %s341 = sadd.s32 %s340, 1
      %p344 = scmp.eq.s32.totalorder %s54, 1
      %p345 = scmp.ne.s32.totalorder %s340, %s342
      %p346 = scmp.eq.s32.totalorder %s54, 0
      %p347 = por %p345, %p346
      %p348 = scmp.ne.s32.totalorder %s340, %s342
      %p349 = scmp.eq.s32.totalorder %s59, 1
      %p350 = por %p348, %p349
      %p351 = scmp.ne.s32.totalorder %s342, %s343
      %p352 = scmp.eq.s32.totalorder %s59, 0
      %p353 = por %p351, %p352
      %p354 = scmp.ne.s32.totalorder %s342, %s343
      %p355 = scmp.eq.s32.totalorder %s60, 1
      %p356 = por %p354, %p355
      %p358 = scmp.ne.s32.totalorder %s343, %s357
      %p359 = scmp.eq.s32.totalorder %s60, 0
      %p360 = por %p358, %p359
      %s362 = sadd.s32 %s361, 1
      %p365 = scmp.eq.s32.totalorder %s54, 1
      %p366 = scmp.ne.s32.totalorder %s361, %s363
      %p367 = scmp.eq.s32.totalorder %s54, 0
      %p368 = por %p366, %p367
      %p369 = scmp.ne.s32.totalorder %s361, %s363
      %p370 = scmp.eq.s32.totalorder %s59, 1
      %p371 = por %p369, %p370
      %p372 = scmp.ne.s32.totalorder %s363, %s364
      %p373 = scmp.eq.s32.totalorder %s59, 0
      %p374 = por %p372, %p373
      %p375 = scmp.ne.s32.totalorder %s363, %s364
      %p376 = scmp.eq.s32.totalorder %s60, 1
      %p377 = por %p375, %p376
      %p379 = scmp.ne.s32.totalorder %s364, %s378
      %p380 = scmp.eq.s32.totalorder %s60, 0
      %p381 = por %p379, %p380
      %s383 = sadd.s32 %s382, 1
      %p386 = scmp.eq.s32.totalorder %s54, 1
      %p387 = scmp.ne.s32.totalorder %s382, %s384
      %p388 = scmp.eq.s32.totalorder %s54, 0
      %p389 = por %p387, %p388
      %p390 = scmp.ne.s32.totalorder %s382, %s384
      %p391 = scmp.eq.s32.totalorder %s59, 1
      %p392 = por %p390, %p391
      %p393 = scmp.ne.s32.totalorder %s384, %s385
      %p394 = scmp.eq.s32.totalorder %s59, 0
      %p395 = por %p393, %p394
      %p396 = scmp.ne.s32.totalorder %s384, %s385
      %p397 = scmp.eq.s32.totalorder %s60, 1
      %p398 = por %p396, %p397
      %p400 = scmp.ne.s32.totalorder %s385, %s399
      %p401 = scmp.eq.s32.totalorder %s60, 0
      %p402 = por %p400, %p401
      %s404 = sadd.s32 %s403, 1
      %p407 = scmp.eq.s32.totalorder %s54, 1
      %p408 = scmp.ne.s32.totalorder %s403, %s405
      %p409 = scmp.eq.s32.totalorder %s54, 0
      %p410 = por %p408, %p409
      %p411 = scmp.ne.s32.totalorder %s403, %s405
      %p412 = scmp.eq.s32.totalorder %s59, 1
      %p413 = por %p411, %p412
      %p414 = scmp.ne.s32.totalorder %s405, %s406
      %p415 = scmp.eq.s32.totalorder %s59, 0
      %p416 = por %p414, %p415
      %p417 = scmp.ne.s32.totalorder %s405, %s406
      %p418 = scmp.eq.s32.totalorder %s60, 1
      %p419 = por %p417, %p418
      %p421 = scmp.ne.s32.totalorder %s406, %s420
      %p422 = scmp.eq.s32.totalorder %s60, 0
      %p423 = por %p421, %p422
      %s425 = sadd.s32 %s424, 1
      %p428 = scmp.eq.s32.totalorder %s54, 1
      %p429 = scmp.ne.s32.totalorder %s424, %s426
      %p430 = scmp.eq.s32.totalorder %s54, 0
      %p431 = por %p429, %p430
      %p432 = scmp.ne.s32.totalorder %s424, %s426
      %p433 = scmp.eq.s32.totalorder %s59, 1
      %p434 = por %p432, %p433
      %p435 = scmp.ne.s32.totalorder %s426, %s427
      %p436 = scmp.eq.s32.totalorder %s59, 0
      %p437 = por %p435, %p436
      %p438 = scmp.ne.s32.totalorder %s426, %s427
      %p439 = scmp.eq.s32.totalorder %s60, 1
      %p440 = por %p438, %p439
      %p442 = scmp.ne.s32.totalorder %s427, %s441
      %p443 = scmp.eq.s32.totalorder %s60, 0
      %p444 = por %p442, %p443
      %s445 = ssub.s32 %s54, %s61
      %p446 = scmp.eq.s32.totalorder %s445, 0
      %s448 = sadd.s32 %s447, 1
      %s449 = scalar_select %p446, %s447, %s448
      %p452 = pneg %p446
      %p453 = scmp.eq.s32.totalorder %s54, 1
      %p454 = por %p452, %p453
      %p455 = scmp.ne.s32.totalorder %s447, %s450
      %p456 = scmp.eq.s32.totalorder %s54, 0
      %p457 = por %p455, %p456
      %p458 = scmp.ne.s32.totalorder %s447, %s450
      %p459 = scmp.eq.s32.totalorder %s59, 1
      %p460 = por %p458, %p459
      %p461 = scmp.ne.s32.totalorder %s450, %s451
      %p462 = scmp.eq.s32.totalorder %s59, 0
      %p463 = por %p461, %p462
      %p464 = scmp.ne.s32.totalorder %s450, %s451
      %p465 = scmp.eq.s32.totalorder %s60, 1
      %p466 = por %p464, %p465
      %p468 = scmp.ne.s32.totalorder %s451, %s467
      %p469 = scmp.eq.s32.totalorder %s60, 0
      %p470 = por %p468, %p469
      %s471 = ssub.s32 %s54, %s61
      %p472 = scmp.eq.s32.totalorder %s471, 0
      %s474 = sadd.s32 %s473, 1
      %s475 = scalar_select %p472, %s473, %s474
      %p478 = pneg %p472
      %p479 = scmp.eq.s32.totalorder %s54, 1
      %p480 = por %p478, %p479
      %p481 = scmp.ne.s32.totalorder %s473, %s476
      %p482 = scmp.eq.s32.totalorder %s54, 0
      %p483 = por %p481, %p482
      %p484 = scmp.ne.s32.totalorder %s473, %s476
      %p485 = scmp.eq.s32.totalorder %s59, 1
      %p486 = por %p484, %p485
      %p487 = scmp.ne.s32.totalorder %s476, %s477
      %p488 = scmp.eq.s32.totalorder %s59, 0
      %p489 = por %p487, %p488
      %p490 = scmp.ne.s32.totalorder %s476, %s477
      %p491 = scmp.eq.s32.totalorder %s60, 1
      %p492 = por %p490, %p491
      %p494 = scmp.ne.s32.totalorder %s477, %s493
      %p495 = scmp.eq.s32.totalorder %s60, 0
      %p496 = por %p494, %p495
      %s497 = ssub.s32 %s54, %s61
      %p498 = scmp.eq.s32.totalorder %s497, 0
      %s500 = sadd.s32 %s499, 1
      %s501 = scalar_select %p498, %s499, %s500
      %p504 = pneg %p498
      %p505 = scmp.eq.s32.totalorder %s54, 1
      %p506 = por %p504, %p505
      %p507 = scmp.ne.s32.totalorder %s499, %s502
      %p508 = scmp.eq.s32.totalorder %s54, 0
      %p509 = por %p507, %p508
      %p510 = scmp.ne.s32.totalorder %s499, %s502
      %p511 = scmp.eq.s32.totalorder %s59, 1
      %p512 = por %p510, %p511
      %p513 = scmp.ne.s32.totalorder %s502, %s503
      %p514 = scmp.eq.s32.totalorder %s59, 0
      %p515 = por %p513, %p514
      %p516 = scmp.ne.s32.totalorder %s502, %s503
      %p517 = scmp.eq.s32.totalorder %s60, 1
      %p518 = por %p516, %p517
      %p520 = scmp.ne.s32.totalorder %s503, %s519
      %p521 = scmp.eq.s32.totalorder %s60, 0
      %p522 = por %p520, %p521
      %s523 = ssub.s32 %s54, %s61
      %p524 = scmp.eq.s32.totalorder %s523, 0
      %s526 = sadd.s32 %s525, 1
      %s527 = scalar_select %p524, %s525, %s526
      %p530 = pneg %p524
      %p531 = scmp.eq.s32.totalorder %s54, 1
      %p532 = por %p530, %p531
      %p533 = scmp.ne.s32.totalorder %s525, %s528
      %p534 = scmp.eq.s32.totalorder %s54, 0
      %p535 = por %p533, %p534
      %p536 = scmp.ne.s32.totalorder %s525, %s528
      %p537 = scmp.eq.s32.totalorder %s59, 1
      %p538 = por %p536, %p537
      %p539 = scmp.ne.s32.totalorder %s528, %s529
      %p540 = scmp.eq.s32.totalorder %s59, 0
      %p541 = por %p539, %p540
      %p542 = scmp.ne.s32.totalorder %s528, %s529
      %p543 = scmp.eq.s32.totalorder %s60, 1
      %p544 = por %p542, %p543
      %p546 = scmp.ne.s32.totalorder %s529, %s545
      %p547 = scmp.eq.s32.totalorder %s60, 0
      %p548 = por %p546, %p547
      %p549 = scmp.le.s32.totalorder 1, %s54
      %p550 = scmp.lt.s32.totalorder %s54, 3
      %p551 = pnand %p549, %p550
      %p552 = pneg %p551
      // Predicated region
      $region9: #{tpu_custom_call.1} parent=5 // pred_check
        _
      $region10: #{tpu_custom_call.1} parent=5 // pred_check_branch
        %554 = sbr.rel (%p551) target = $region12
      $region11: #{tpu_custom_call.1} parent=5 // pred_region
        %s555 = ssub.s32 %s54, 1
        // Predicated region
        $region13: #{tpu_custom_call.1} parent=11 // pred_check
          %p556 = pneg %p101
        $region14: #{tpu_custom_call.1} parent=11 // pred_check_branch
          %558 = sbr.rel (%p556) target = $region16
        $region15: #{tpu_custom_call.1} parent=11 // pred_region
          %s560 = ssub.s32 16, 16
          %561 = vsyncadd [#allocation8], %s560
          %s563 = sshll.u32 [#allocation7], 4
          %s564 = int_to_ptr.vmem [resolvable:$true] %s563
          %566 = dma.hbm_to_vmem [thread:$0]  %s2, 16, %s564, [#allocation8]
        $region16: #{tpu_custom_call.1} parent=11 // pred_fallthru
          _
        // Predicated region
        $region17: #{tpu_custom_call.1} parent=11 // pred_check
          %p567 = pneg %p122
        $region18: #{tpu_custom_call.1} parent=11 // pred_check_branch
          %569 = sbr.rel (%p567) target = $region20
        $region19: #{tpu_custom_call.1} parent=11 // pred_region
          %s571 = ssub.s32 16, 16
          %572 = vsyncadd [#allocation8], %s571
          %s574 = sshll.u32 [#allocation9], 4
          %s575 = int_to_ptr.vmem [resolvable:$true] %s574
          %577 = dma.hbm_to_vmem [thread:$0]  %s3, 16, %s575, [#allocation8]
        $region20: #{tpu_custom_call.1} parent=11 // pred_fallthru
          _
        // Predicated region
        $region21: #{tpu_custom_call.1} parent=11 // pred_check
          %p578 = pneg %p143
        $region22: #{tpu_custom_call.1} parent=11 // pred_check_branch
          %580 = sbr.rel (%p578) target = $region24
        $region23: #{tpu_custom_call.1} parent=11 // pred_region
          %s582 = ssub.s32 256, 256
          %583 = vsyncadd [#allocation11], %s582
          %s584 = sshll.u32 [#allocation10], 4
          %s585 = int_to_ptr.vmem [resolvable:$true] %s584
          %590 = dma.hbm_to_vmem [thread:$0]  %s4, 256, %s585, [#allocation11], 64, 64, 4
        $region24: #{tpu_custom_call.1} parent=11 // pred_fallthru
          _
        // Predicated region
        $region25: #{tpu_custom_call.1} parent=11 // pred_check
          %p591 = pneg %p164
        $region26: #{tpu_custom_call.1} parent=11 // pred_check_branch
          %593 = sbr.rel (%p591) target = $region28
        $region27: #{tpu_custom_call.1} parent=11 // pred_region
          %s595 = ssub.s32 16, 16
          %596 = vsyncadd [#allocation11], %s595
          %s598 = sshll.u32 [#allocation12], 4
          %s599 = int_to_ptr.vmem [resolvable:$true] %s598
          %601 = dma.hbm_to_vmem [thread:$0]  %s5, 16, %s599, [#allocation11]
        $region28: #{tpu_custom_call.1} parent=11 // pred_fallthru
          _
        // Predicated region
        $region29: #{tpu_custom_call.1} parent=11 // pred_check
          %p602 = pneg %p185
        $region30: #{tpu_custom_call.1} parent=11 // pred_check_branch
          %604 = sbr.rel (%p602) target = $region32
        $region31: #{tpu_custom_call.1} parent=11 // pred_region
          %s606 = ssub.s32 256, 256
          %607 = vsyncadd [#allocation14], %s606
          %s608 = sshll.u32 [#allocation13], 4
          %s609 = int_to_ptr.vmem [resolvable:$true] %s608
          %614 = dma.hbm_to_vmem [thread:$0]  %s6, 256, %s609, [#allocation14], 64, 64, 4
        $region32: #{tpu_custom_call.1} parent=11 // pred_fallthru
          _
        // Predicated region
        $region33: #{tpu_custom_call.1} parent=11 // pred_check
          %p615 = pneg %p206
        $region34: #{tpu_custom_call.1} parent=11 // pred_check_branch
          %617 = sbr.rel (%p615) target = $region36
        $region35: #{tpu_custom_call.1} parent=11 // pred_region
          %s619 = ssub.s32 16, 16
          %620 = vsyncadd [#allocation14], %s619
          %s622 = sshll.u32 [#allocation15], 4
          %s623 = int_to_ptr.vmem [resolvable:$true] %s622
          %625 = dma.hbm_to_vmem [thread:$0]  %s7, 16, %s623, [#allocation14]
        $region36: #{tpu_custom_call.1} parent=11 // pred_fallthru
          _
        // Predicated region
        $region37: #{tpu_custom_call.1} parent=11 // pred_check
          %p626 = pneg %p227
        $region38: #{tpu_custom_call.1} parent=11 // pred_check_branch
          %628 = sbr.rel (%p626) target = $region40
        $region39: #{tpu_custom_call.1} parent=11 // pred_region
          %s630 = ssub.s32 256, 256
          %631 = vsyncadd [#allocation17], %s630
          %s632 = sshll.u32 [#allocation16], 4
          %s633 = int_to_ptr.vmem [resolvable:$true] %s632
          %638 = dma.hbm_to_vmem [thread:$0]  %s8, 256, %s633, [#allocation17], 64, 64, 4
        $region40: #{tpu_custom_call.1} parent=11 // pred_fallthru
          _
        // Predicated region
        $region41: #{tpu_custom_call.1} parent=11 // pred_check
          %p639 = pneg %p248
        $region42: #{tpu_custom_call.1} parent=11 // pred_check_branch
          %641 = sbr.rel (%p639) target = $region44
        $region43: #{tpu_custom_call.1} parent=11 // pred_region
          %s643 = ssub.s32 16, 16
          %644 = vsyncadd [#allocation17], %s643
          %s646 = sshll.u32 [#allocation18], 4
          %s647 = int_to_ptr.vmem [resolvable:$true] %s646
          %649 = dma.hbm_to_vmem [thread:$0]  %s9, 16, %s647, [#allocation17]
        $region44: #{tpu_custom_call.1} parent=11 // pred_fallthru
          _
        // Predicated region
        $region45: #{tpu_custom_call.1} parent=11 // pred_check
          %p650 = pneg %p269
        $region46: #{tpu_custom_call.1} parent=11 // pred_check_branch
          %652 = sbr.rel (%p650) target = $region48
        $region47: #{tpu_custom_call.1} parent=11 // pred_region
          %s654 = ssub.s32 16, 16
          %655 = vsyncadd [#allocation20], %s654
          %s657 = sshll.u32 [#allocation19], 4
          %s658 = int_to_ptr.vmem [resolvable:$true] %s657
          %660 = dma.hbm_to_vmem [thread:$0]  %s10, 16, %s658, [#allocation20]
        $region48: #{tpu_custom_call.1} parent=11 // pred_fallthru
          _
        // Predicated region
        $region49: #{tpu_custom_call.1} parent=11 // pred_check
          %p661 = pneg %p290
        $region50: #{tpu_custom_call.1} parent=11 // pred_check_branch
          %663 = sbr.rel (%p661) target = $region52
        $region51: #{tpu_custom_call.1} parent=11 // pred_region
          %s665 = ssub.s32 256, 256
          %666 = vsyncadd [#allocation20], %s665
          %s667 = sshll.u32 [#allocation21], 4
          %s668 = int_to_ptr.vmem [resolvable:$true] %s667
          %673 = dma.hbm_to_vmem [thread:$0]  %s11, 256, %s668, [#allocation20], 64, 64, 4
        $region52: #{tpu_custom_call.1} parent=11 // pred_fallthru
          _
        // Predicated region
        $region53: #{tpu_custom_call.1} parent=11 // pred_check
          %p674 = pneg %p311
        $region54: #{tpu_custom_call.1} parent=11 // pred_check_branch
          %676 = sbr.rel (%p674) target = $region56
        $region55: #{tpu_custom_call.1} parent=11 // pred_region
          %s678 = ssub.s32 16, 16
          %679 = vsyncadd [#allocation23], %s678
          %s681 = sshll.u32 [#allocation22], 4
          %s682 = int_to_ptr.vmem [resolvable:$true] %s681
          %684 = dma.hbm_to_vmem [thread:$0]  %s12, 16, %s682, [#allocation23]
        $region56: #{tpu_custom_call.1} parent=11 // pred_fallthru
          _
        // Predicated region
        $region57: #{tpu_custom_call.1} parent=11 // pred_check
          %p685 = pneg %p332
        $region58: #{tpu_custom_call.1} parent=11 // pred_check_branch
          %687 = sbr.rel (%p685) target = $region60
        $region59: #{tpu_custom_call.1} parent=11 // pred_region
          %s689 = ssub.s32 256, 256
          %690 = vsyncadd [#allocation23], %s689
          %s691 = sshll.u32 [#allocation24], 4
          %s692 = int_to_ptr.vmem [resolvable:$true] %s691
          %697 = dma.hbm_to_vmem [thread:$0]  %s13, 256, %s692, [#allocation23], 64, 64, 4
        $region60: #{tpu_custom_call.1} parent=11 // pred_fallthru
          _
        // Predicated region
        $region61: #{tpu_custom_call.1} parent=11 // pred_check
          %p698 = pneg %p353
        $region62: #{tpu_custom_call.1} parent=11 // pred_check_branch
          %700 = sbr.rel (%p698) target = $region64
        $region63: #{tpu_custom_call.1} parent=11 // pred_region
          %s702 = ssub.s32 16, 16
          %703 = vsyncadd [#allocation26], %s702
          %s705 = sshll.u32 [#allocation25], 4
          %s706 = int_to_ptr.vmem [resolvable:$true] %s705
          %708 = dma.hbm_to_vmem [thread:$0]  %s14, 16, %s706, [#allocation26]
        $region64: #{tpu_custom_call.1} parent=11 // pred_fallthru
          _
        // Predicated region
        $region65: #{tpu_custom_call.1} parent=11 // pred_check
          %p709 = pneg %p374
        $region66: #{tpu_custom_call.1} parent=11 // pred_check_branch
          %711 = sbr.rel (%p709) target = $region68
        $region67: #{tpu_custom_call.1} parent=11 // pred_region
          %s713 = ssub.s32 1024, 1024
          %714 = vsyncadd [#allocation26], %s713
          %s715 = sshll.u32 [#allocation27], 4
          %s716 = int_to_ptr.vmem [resolvable:$true] %s715
          %721 = dma.hbm_to_vmem [thread:$0]  %s15, 1024, %s716, [#allocation26], 64, 64, 4
        $region68: #{tpu_custom_call.1} parent=11 // pred_fallthru
          _
        // Predicated region
        $region69: #{tpu_custom_call.1} parent=11 // pred_check
          %p722 = pneg %p395
        $region70: #{tpu_custom_call.1} parent=11 // pred_check_branch
          %724 = sbr.rel (%p722) target = $region72
        $region71: #{tpu_custom_call.1} parent=11 // pred_region
          %s726 = ssub.s32 16, 16
          %727 = vsyncadd [#allocation29], %s726
          %s729 = sshll.u32 [#allocation28], 4
          %s730 = int_to_ptr.vmem [resolvable:$true] %s729
          %732 = dma.hbm_to_vmem [thread:$0]  %s16, 16, %s730, [#allocation29]
        $region72: #{tpu_custom_call.1} parent=11 // pred_fallthru
          _
        // Predicated region
        $region73: #{tpu_custom_call.1} parent=11 // pred_check
          %p733 = pneg %p416
        $region74: #{tpu_custom_call.1} parent=11 // pred_check_branch
          %735 = sbr.rel (%p733) target = $region76
        $region75: #{tpu_custom_call.1} parent=11 // pred_region
          %s737 = ssub.s32 16, 16
          %738 = vsyncadd [#allocation29], %s737
          %s740 = sshll.u32 [#allocation30], 4
          %s741 = int_to_ptr.vmem [resolvable:$true] %s740
          %743 = dma.hbm_to_vmem [thread:$0]  %s17, 16, %s741, [#allocation29]
        $region76: #{tpu_custom_call.1} parent=11 // pred_fallthru
          _
        // Predicated region
        $region77: #{tpu_custom_call.1} parent=11 // pred_check
          %p744 = pneg %p437
        $region78: #{tpu_custom_call.1} parent=11 // pred_check_branch
          %746 = sbr.rel (%p744) target = $region80
        $region79: #{tpu_custom_call.1} parent=11 // pred_region
          %s748 = ssub.s32 16, 16
          %749 = vsyncadd [#allocation32], %s748
          %s751 = sshll.u32 [#allocation31], 4
          %s752 = int_to_ptr.vmem [resolvable:$true] %s751
          %754 = dma.hbm_to_vmem [thread:$0]  %s18, 16, %s752, [#allocation32]
        $region80: #{tpu_custom_call.1} parent=11 // pred_fallthru
          _
      $region12: #{tpu_custom_call.1} parent=5 // pred_fallthru
        _
      %p755 = scmp.lt.s32.totalorder %s54, 2
      // Predicated region
      $region81: #{tpu_custom_call.1} parent=5 // pred_check
        %p756 = pneg %p755
      $region82: #{tpu_custom_call.1} parent=5 // pred_check_branch
        %758 = sbr.rel (%p756) target = $region84
      $region83: #{tpu_custom_call.1} parent=5 // pred_region
        // Predicated region
        $region85: #{tpu_custom_call.1} parent=83 // pred_check
          %p759 = pneg %p74
        $region86: #{tpu_custom_call.1} parent=83 // pred_check_branch
          %761 = sbr.rel (%p759) target = $region88
        $region87: #{tpu_custom_call.1} parent=83 // pred_region
          %s762 = sand.u32 %s64, 1
          %s763 = scalar_lea.sflag [#allocation5], %s762
          %s764 = sand.u32 %s64, 1
          %s765 = smul.addr %s764, 8
          %s766 = scalar_lea.vmem [#allocation4], %s765
          %s768 = ssub.s32 128, 128
          %769 = vsyncadd %s763, %s768
          %s770 = smul.addr %s54, 128
          %s771 = scalar_lea.hbm %s1, %s770
          %s773 = sshll.u32 %s766, 4
          %s774 = int_to_ptr.vmem [resolvable:$true] %s773
          %776 = dma.hbm_to_vmem [thread:$0]  %s771, 128, %s774, %s763
        $region88: #{tpu_custom_call.1} parent=83 // pred_fallthru
          _
      $region84: #{tpu_custom_call.1} parent=5 // pred_fallthru
        _
      %p777 = scmp.le.s32.totalorder 1, %s54
      %p778 = scmp.lt.s32.totalorder %s54, 3
      %p779 = pnand %p777, %p778
      %p780 = pneg %p779
      // Predicated region
      $region89: #{tpu_custom_call.1} parent=5 // pred_check
        _
      $region90: #{tpu_custom_call.1} parent=5 // pred_check_branch
        %782 = sbr.rel (%p779) target = $region92
      $region91: #{tpu_custom_call.1} parent=5 // pred_region
        %s783 = ssub.s32 %s54, 1
        %s784 = sand.u32 %s67, 1
        %s785 = scalar_lea.sflag [#allocation5], %s784
        %s786 = sand.u32 %s67, 1
        %s787 = smul.addr %s786, 8
        %s788 = scalar_lea.vmem [#allocation4], %s787
        // Predicated region
        $region93: #{tpu_custom_call.1} parent=91 // pred_check
          %p789 = pneg %p80
        $region94: #{tpu_custom_call.1} parent=91 // pred_check_branch
          %791 = sbr.rel (%p789) target = $region96
        $region95: #{tpu_custom_call.1} parent=91 // pred_region
          %792 = dma.done %s785, 128
        $region96: #{tpu_custom_call.1} parent=91 // pred_fallthru
          _
        // Predicated region
        $region97: #{tpu_custom_call.1} parent=91 // pred_check
          %p793 = pneg %p101
        $region98: #{tpu_custom_call.1} parent=91 // pred_check_branch
          %795 = sbr.rel (%p793) target = $region100
        $region99: #{tpu_custom_call.1} parent=91 // pred_region
          %796 = dma.done [#allocation8], 16
        $region100: #{tpu_custom_call.1} parent=91 // pred_fallthru
          _
        // Predicated region
        $region101: #{tpu_custom_call.1} parent=91 // pred_check
          %p797 = pneg %p122
        $region102: #{tpu_custom_call.1} parent=91 // pred_check_branch
          %799 = sbr.rel (%p797) target = $region104
        $region103: #{tpu_custom_call.1} parent=91 // pred_region
          %800 = dma.done [#allocation8], 16
        $region104: #{tpu_custom_call.1} parent=91 // pred_fallthru
          _
        // Predicated region
        $region105: #{tpu_custom_call.1} parent=91 // pred_check
          %p801 = pneg %p143
        $region106: #{tpu_custom_call.1} parent=91 // pred_check_branch
          %803 = sbr.rel (%p801) target = $region108
        $region107: #{tpu_custom_call.1} parent=91 // pred_region
          %804 = dma.done [#allocation11], 256
        $region108: #{tpu_custom_call.1} parent=91 // pred_fallthru
          _
        // Predicated region
        $region109: #{tpu_custom_call.1} parent=91 // pred_check
          %p805 = pneg %p164
        $region110: #{tpu_custom_call.1} parent=91 // pred_check_branch
          %807 = sbr.rel (%p805) target = $region112
        $region111: #{tpu_custom_call.1} parent=91 // pred_region
          %808 = dma.done [#allocation11], 16
        $region112: #{tpu_custom_call.1} parent=91 // pred_fallthru
          _
        // Predicated region
        $region113: #{tpu_custom_call.1} parent=91 // pred_check
          %p809 = pneg %p185
        $region114: #{tpu_custom_call.1} parent=91 // pred_check_branch
          %811 = sbr.rel (%p809) target = $region116
        $region115: #{tpu_custom_call.1} parent=91 // pred_region
          %812 = dma.done [#allocation14], 256
        $region116: #{tpu_custom_call.1} parent=91 // pred_fallthru
          _
        // Predicated region
        $region117: #{tpu_custom_call.1} parent=91 // pred_check
          %p813 = pneg %p206
        $region118: #{tpu_custom_call.1} parent=91 // pred_check_branch
          %815 = sbr.rel (%p813) target = $region120
        $region119: #{tpu_custom_call.1} parent=91 // pred_region
          %816 = dma.done [#allocation14], 16
        $region120: #{tpu_custom_call.1} parent=91 // pred_fallthru
          _
        // Predicated region
        $region121: #{tpu_custom_call.1} parent=91 // pred_check
          %p817 = pneg %p227
        $region122: #{tpu_custom_call.1} parent=91 // pred_check_branch
          %819 = sbr.rel (%p817) target = $region124
        $region123: #{tpu_custom_call.1} parent=91 // pred_region
          %820 = dma.done [#allocation17], 256
        $region124: #{tpu_custom_call.1} parent=91 // pred_fallthru
          _
        // Predicated region
        $region125: #{tpu_custom_call.1} parent=91 // pred_check
          %p821 = pneg %p248
        $region126: #{tpu_custom_call.1} parent=91 // pred_check_branch
          %823 = sbr.rel (%p821) target = $region128
        $region127: #{tpu_custom_call.1} parent=91 // pred_region
          %824 = dma.done [#allocation17], 16
        $region128: #{tpu_custom_call.1} parent=91 // pred_fallthru
          _
        // Predicated region
        $region129: #{tpu_custom_call.1} parent=91 // pred_check
          %p825 = pneg %p269
        $region130: #{tpu_custom_call.1} parent=91 // pred_check_branch
          %827 = sbr.rel (%p825) target = $region132
        $region131: #{tpu_custom_call.1} parent=91 // pred_region
          %828 = dma.done [#allocation20], 16
        $region132: #{tpu_custom_call.1} parent=91 // pred_fallthru
          _
        // Predicated region
        $region133: #{tpu_custom_call.1} parent=91 // pred_check
          %p829 = pneg %p290
        $region134: #{tpu_custom_call.1} parent=91 // pred_check_branch
          %831 = sbr.rel (%p829) target = $region136
        $region135: #{tpu_custom_call.1} parent=91 // pred_region
          %832 = dma.done [#allocation20], 256
        $region136: #{tpu_custom_call.1} parent=91 // pred_fallthru
          _
        // Predicated region
        $region137: #{tpu_custom_call.1} parent=91 // pred_check
          %p833 = pneg %p311
        $region138: #{tpu_custom_call.1} parent=91 // pred_check_branch
          %835 = sbr.rel (%p833) target = $region140
        $region139: #{tpu_custom_call.1} parent=91 // pred_region
          %836 = dma.done [#allocation23], 16
        $region140: #{tpu_custom_call.1} parent=91 // pred_fallthru
          _
        // Predicated region
        $region141: #{tpu_custom_call.1} parent=91 // pred_check
          %p837 = pneg %p332
        $region142: #{tpu_custom_call.1} parent=91 // pred_check_branch
          %839 = sbr.rel (%p837) target = $region144
        $region143: #{tpu_custom_call.1} parent=91 // pred_region
          %840 = dma.done [#allocation23], 256
        $region144: #{tpu_custom_call.1} parent=91 // pred_fallthru
          _
        // Predicated region
        $region145: #{tpu_custom_call.1} parent=91 // pred_check
          %p841 = pneg %p353
        $region146: #{tpu_custom_call.1} parent=91 // pred_check_branch
          %843 = sbr.rel (%p841) target = $region148
        $region147: #{tpu_custom_call.1} parent=91 // pred_region
          %844 = dma.done [#allocation26], 16
        $region148: #{tpu_custom_call.1} parent=91 // pred_fallthru
          _
        // Predicated region
        $region149: #{tpu_custom_call.1} parent=91 // pred_check
          %p845 = pneg %p374
        $region150: #{tpu_custom_call.1} parent=91 // pred_check_branch
          %847 = sbr.rel (%p845) target = $region152
        $region151: #{tpu_custom_call.1} parent=91 // pred_region
          %848 = dma.done [#allocation26], 1024
        $region152: #{tpu_custom_call.1} parent=91 // pred_fallthru
          _
        // Predicated region
        $region153: #{tpu_custom_call.1} parent=91 // pred_check
          %p849 = pneg %p395
        $region154: #{tpu_custom_call.1} parent=91 // pred_check_branch
          %851 = sbr.rel (%p849) target = $region156
        $region155: #{tpu_custom_call.1} parent=91 // pred_region
          %852 = dma.done [#allocation29], 16
        $region156: #{tpu_custom_call.1} parent=91 // pred_fallthru
          _
        // Predicated region
        $region157: #{tpu_custom_call.1} parent=91 // pred_check
          %p853 = pneg %p416
        $region158: #{tpu_custom_call.1} parent=91 // pred_check_branch
          %855 = sbr.rel (%p853) target = $region160
        $region159: #{tpu_custom_call.1} parent=91 // pred_region
          %856 = dma.done [#allocation29], 16
        $region160: #{tpu_custom_call.1} parent=91 // pred_fallthru
          _
        // Predicated region
        $region161: #{tpu_custom_call.1} parent=91 // pred_check
          %p857 = pneg %p437
        $region162: #{tpu_custom_call.1} parent=91 // pred_check_branch
          %859 = sbr.rel (%p857) target = $region164
        $region163: #{tpu_custom_call.1} parent=91 // pred_region
          %860 = dma.done [#allocation32], 16
        $region164: #{tpu_custom_call.1} parent=91 // pred_fallthru
          _
        %s861 = sand.u32 %s67, 1
        %s862 = scalar_lea.sflag [#allocation5], %s861
        %s863 = sand.u32 %s67, 1
        %s864 = smul.addr %s863, 8
        %s865 = scalar_lea.vmem [#allocation4], %s864
        %p866 = pneg %p80
        %p867 = pneg %p77
        %p868 = pneg %p101
        %p869 = pneg %p98
        %p870 = pneg %p122
        %p871 = pneg %p119
        %p872 = pneg %p143
        %p873 = pneg %p140
        %p874 = pneg %p164
        %p875 = pneg %p161
        %p876 = pneg %p185
        %p877 = pneg %p182
        %p878 = pneg %p206
        %p879 = pneg %p203
        %p880 = pneg %p227
        %p881 = pneg %p224
        %p882 = pneg %p248
        %p883 = pneg %p245
        %p884 = pneg %p269
        %p885 = pneg %p266
        %p886 = pneg %p290
        %p887 = pneg %p287
        %p888 = pneg %p311
        %p889 = pneg %p308
        %p890 = pneg %p332
        %p891 = pneg %p329
        %p892 = pneg %p353
        %p893 = pneg %p350
        %p894 = pneg %p374
        %p895 = pneg %p371
        %p896 = pneg %p395
        %p897 = pneg %p392
        %p898 = pneg %p416
        %p899 = pneg %p413
        %p900 = pneg %p437
        %p901 = pneg %p434
        %p902 = pneg %p463
        %p903 = pneg %p460
        %s904 = sand.u32 %s450, 1
        %s905 = scalar_lea.sflag [#allocation6], %s904
        %s906 = sand.u32 %s450, 1
        %s907 = smul.addr %s906, 8
        %s908 = scalar_lea.vmem [#allocation33], %s907
        %p909 = pneg %p489
        %p910 = pneg %p486
        %s911 = sand.u32 %s59, 1
        %s912 = scalar_lea.sflag [#allocation35], %s911
        %s913 = sand.u32 %s476, 1
        %s914 = smul.addr %s913, 8
        %s915 = scalar_lea.vmem [#allocation34], %s914
        %p916 = pneg %p515
        %p917 = pneg %p512
        %s918 = sand.u32 %s59, 1
        %s919 = scalar_lea.sflag [#allocation35], %s918
        %s920 = sand.u32 %s502, 1
        %s921 = smul.addr %s920, 8
        %s922 = scalar_lea.vmem [#allocation36], %s921
        %p923 = pneg %p541
        %p924 = pneg %p538
        %s925 = sand.u32 %s528, 1
        %s926 = scalar_lea.sflag [#allocation38], %s925
        %s927 = sand.u32 %s528, 1
        %s928 = smul.addr %s927, 8
        %s929 = scalar_lea.vmem [#allocation37], %s928
        %v931 = vld [vmem:[%s788] sm:$0xff]
        %v932 = vld [vmem:[#allocation7] sm:$0x1]
        %v933 = vld [vmem:[#allocation9] sm:$0x1]
        %vm934 = vcmask 261120
        %v935 = vsel %vm934, %v931, 0.0
        %936 = vadd.xlane.f32.xlu0 %v935
        %v937 = vpop.xlane.xlu0 %936
        %v938 = vrcp.pop 32.0
        %v939 = vmul.f32 %v937, %v938
        %v940 = vsub.f32 %v931, %v939
        %v941 = vmul.f32 %v940, %v940
        %v942 = vsel %vm934, %v941, 0.0
        %943 = vadd.xlane.f32.xlu0 %v942
        %v944 = vpop.xlane.xlu0 %943
        %v945 = vmul.f32 %v944, %v938
        %v946 = vadd.f32 %v945, 1e-05
        %v947 = vrsqrt.pop %v946
        %v948 = vmul.f32 %v940, %v947
        %v950 = vlaneseq
        %v951 = vshrl.u32 %v950, 7
        %v952 = vsub.s32 0, %v951
        %v953 = vrot.slane %v932, %v952
        %v955 = vmul.f32 %v948, %v953
        %v957 = vlaneseq
        %v958 = vshrl.u32 %v957, 7
        %v959 = vsub.s32 0, %v958
        %v960 = vrot.slane %v933, %v959
        %v962 = vadd.f32 %v955, %v960
        %v963 = vpack.c.bf16 %v962, %v962
        %v964 = vld [vmem:[#allocation10] sm:$0xf]
        %v965 = vld [vmem:[#allocation10 + $0x4] sm:$0xf]
        %v966 = vld [vmem:[#allocation10 + $0x8] sm:$0xf]
        %v967 = vld [vmem:[#allocation10 + $0xc] sm:$0xf]
        %v968 = vld [vmem:[#allocation12] sm:$0x1]
        %v970 = vlaneseq
        %v971 = vshrl.u32 %v970, 7
        %v972 = vsub.s32 0, %v971
        %v973 = vrot.slane %v968, %v972
        %v979 = vunpack.c.l.b16 %v964
        %v980 = vunpack.c.l.b16 %v965
        %v981 = vunpack.c.l.b16 %v966
        %v982 = vunpack.c.l.b16 %v967
        %v983 = vpack.c.b16 %v980, %v979
        %v984 = vpack.c.b16 %v982, %v981
        %v988 = vsel %vm934, %v963, 0
        %990 = vmatprep.subr.bf16.mxu0 0
        %991 = vmatpush1.bf16.msra.mxu0 %v983
        %992 = vmatprep.subr.bf16.mxu0 0
        %993 = vmatpush1.bf16.msra.mxu0 %v984
        %994 = vmatprep.subr.bf16.mxu0 0
        %995 = vmatpush1.bf16.msra.mxu0 0
        %996 = vmatprep.subr.bf16.mxu0 0
        %997 = vmatpush1.bf16.msra.mxu0 0
        %998 = vmatprep.subr.bf16.mxu0 0
        %999 = vmatpush1.bf16.msra.mxu0 0
        %1000 = vmatprep.subr.bf16.mxu0 0
        %1001 = vmatpush1.bf16.msra.mxu0 0
        %1002 = vmatprep.subr.bf16.mxu0 0
        %1003 = vmatpush1.bf16.msra.mxu0 0
        %1004 = vmatprep.subr.bf16.mxu0 0
        %1005 = vmatpush1.bf16.msra.mxu0 0
        %1006 = vmatprep.subr.bf16.mxu0 0
        %1007 = vmatpush1.bf16.msra.mxu0 0
        %1008 = vmatprep.subr.bf16.mxu0 0
        %1009 = vmatpush1.bf16.msra.mxu0 0
        %1010 = vmatprep.subr.bf16.mxu0 0
        %1011 = vmatpush1.bf16.msra.mxu0 0
        %1012 = vmatprep.subr.bf16.mxu0 0
        %1013 = vmatpush1.bf16.msra.mxu0 0
        %1014 = vmatprep.subr.bf16.mxu0 0
        %1015 = vmatpush1.bf16.msra.mxu0 0
        %1016 = vmatprep.subr.bf16.mxu0 0
        %1017 = vmatpush1.bf16.msra.mxu0 0
        %1018 = vmatprep.subr.bf16.mxu0 0
        %1019 = vmatpush1.bf16.msra.mxu0 0
        %1020 = vmatprep.subr.bf16.mxu0 0
        %1021 = vmatpush1.bf16.msra.mxu0 0
        %1022 = vmatprep.mubr.bf16.mxu0 0
        %1023 = vmatmul.mubr.bf16.gmra.mrb[0].mxu0 %v988
        %v1024 = vpop.f32.mrb[0].mxu0
        %v1025 = vadd.f32 %v973, %v1024
        %v1026 = vpop.f32.mrb[0].mxu0
        %v1027 = vpop.f32.mrb[0].mxu0
        %v1028 = vpop.f32.mrb[0].mxu0
        %1029 = vdwg.mxu0
        %v1030 = vmax.f32 %v1025, 0.0
        %v1031 = vld [vmem:[#allocation13] sm:$0xf]
        %v1032 = vld [vmem:[#allocation13 + $0x4] sm:$0xf]
        %v1033 = vld [vmem:[#allocation13 + $0x8] sm:$0xf]
        %v1034 = vld [vmem:[#allocation13 + $0xc] sm:$0xf]
        %v1035 = vld [vmem:[#allocation15] sm:$0x1]
        %v1037 = vlaneseq
        %v1038 = vshrl.u32 %v1037, 7
        %v1039 = vsub.s32 0, %v1038
        %v1040 = vrot.slane %v1035, %v1039
        %v1046 = vunpack.c.l.b16 %v1031
        %v1047 = vunpack.c.l.b16 %v1032
        %v1048 = vunpack.c.l.b16 %v1033
        %v1049 = vunpack.c.l.b16 %v1034
        %v1050 = vpack.c.b16 %v1047, %v1046
        %v1051 = vpack.c.b16 %v1049, %v1048
        %1054 = vmatprep.subr.bf16.mxu0 0
        %1055 = vmatpush1.bf16.msra.mxu0 %v1050
        %1056 = vmatprep.subr.bf16.mxu0 0
        %1057 = vmatpush1.bf16.msra.mxu0 %v1051
        %1058 = vmatprep.subr.bf16.mxu0 0
        %1059 = vmatpush1.bf16.msra.mxu0 0
        %1060 = vmatprep.subr.bf16.mxu0 0
        %1061 = vmatpush1.bf16.msra.mxu0 0
        %1062 = vmatprep.subr.bf16.mxu0 0
        %1063 = vmatpush1.bf16.msra.mxu0 0
        %1064 = vmatprep.subr.bf16.mxu0 0
        %1065 = vmatpush1.bf16.msra.mxu0 0
        %1066 = vmatprep.subr.bf16.mxu0 0
        %1067 = vmatpush1.bf16.msra.mxu0 0
        %1068 = vmatprep.subr.bf16.mxu0 0
        %1069 = vmatpush1.bf16.msra.mxu0 0
        %1070 = vmatprep.subr.bf16.mxu0 0
        %1071 = vmatpush1.bf16.msra.mxu0 0
        %1072 = vmatprep.subr.bf16.mxu0 0
        %1073 = vmatpush1.bf16.msra.mxu0 0
        %1074 = vmatprep.subr.bf16.mxu0 0
        %1075 = vmatpush1.bf16.msra.mxu0 0
        %1076 = vmatprep.subr.bf16.mxu0 0
        %1077 = vmatpush1.bf16.msra.mxu0 0
        %1078 = vmatprep.subr.bf16.mxu0 0
        %1079 = vmatpush1.bf16.msra.mxu0 0
        %1080 = vmatprep.subr.bf16.mxu0 0
        %1081 = vmatpush1.bf16.msra.mxu0 0
        %1082 = vmatprep.subr.bf16.mxu0 0
        %1083 = vmatpush1.bf16.msra.mxu0 0
        %1084 = vmatprep.subr.bf16.mxu0 0
        %1085 = vmatpush1.bf16.msra.mxu0 0
        %1086 = vmatprep.mubr.bf16.mxu0 0
        %1087 = vmatmul.mubr.bf16.gmra.mrb[0].mxu0 %v988
        %v1088 = vpop.f32.mrb[0].mxu0
        %v1089 = vadd.f32 %v1040, %v1088
        %v1090 = vpop.f32.mrb[0].mxu0
        %v1091 = vpop.f32.mrb[0].mxu0
        %v1092 = vpop.f32.mrb[0].mxu0
        %1093 = vdwg.mxu0
        %v1094 = vmax.f32 %v1089, 0.0
        %v1095 = vld [vmem:[#allocation16] sm:$0xf]
        %v1096 = vld [vmem:[#allocation16 + $0x4] sm:$0xf]
        %v1097 = vld [vmem:[#allocation16 + $0x8] sm:$0xf]
        %v1098 = vld [vmem:[#allocation16 + $0xc] sm:$0xf]
        %v1099 = vld [vmem:[#allocation18] sm:$0x1]
        %v1101 = vlaneseq
        %v1102 = vshrl.u32 %v1101, 7
        %v1103 = vsub.s32 0, %v1102
        %v1104 = vrot.slane %v1099, %v1103
        %v1110 = vunpack.c.l.b16 %v1095
        %v1111 = vunpack.c.l.b16 %v1096
        %v1112 = vunpack.c.l.b16 %v1097
        %v1113 = vunpack.c.l.b16 %v1098
        %v1114 = vpack.c.b16 %v1111, %v1110
        %v1115 = vpack.c.b16 %v1113, %v1112
        %1118 = vmatprep.subr.bf16.mxu0 0
        %1119 = vmatpush1.bf16.msra.mxu0 %v1114
        %1120 = vmatprep.subr.bf16.mxu0 0
        %1121 = vmatpush1.bf16.msra.mxu0 %v1115
        %1122 = vmatprep.subr.bf16.mxu0 0
        %1123 = vmatpush1.bf16.msra.mxu0 0
        %1124 = vmatprep.subr.bf16.mxu0 0
        %1125 = vmatpush1.bf16.msra.mxu0 0
        %1126 = vmatprep.subr.bf16.mxu0 0
        %1127 = vmatpush1.bf16.msra.mxu0 0
        %1128 = vmatprep.subr.bf16.mxu0 0
        %1129 = vmatpush1.bf16.msra.mxu0 0
        %1130 = vmatprep.subr.bf16.mxu0 0
        %1131 = vmatpush1.bf16.msra.mxu0 0
        %1132 = vmatprep.subr.bf16.mxu0 0
        %1133 = vmatpush1.bf16.msra.mxu0 0
        %1134 = vmatprep.subr.bf16.mxu0 0
        %1135 = vmatpush1.bf16.msra.mxu0 0
        %1136 = vmatprep.subr.bf16.mxu0 0
        %1137 = vmatpush1.bf16.msra.mxu0 0
        %1138 = vmatprep.subr.bf16.mxu0 0
        %1139 = vmatpush1.bf16.msra.mxu0 0
        %1140 = vmatprep.subr.bf16.mxu0 0
        %1141 = vmatpush1.bf16.msra.mxu0 0
        %1142 = vmatprep.subr.bf16.mxu0 0
        %1143 = vmatpush1.bf16.msra.mxu0 0
        %1144 = vmatprep.subr.bf16.mxu0 0
        %1145 = vmatpush1.bf16.msra.mxu0 0
        %1146 = vmatprep.subr.bf16.mxu0 0
        %1147 = vmatpush1.bf16.msra.mxu0 0
        %1148 = vmatprep.subr.bf16.mxu0 0
        %1149 = vmatpush1.bf16.msra.mxu0 0
        %1150 = vmatprep.mubr.bf16.mxu0 0
        %1151 = vmatmul.mubr.bf16.gmra.mrb[0].mxu0 %v988
        %v1152 = vpop.f32.mrb[0].mxu0
        %v1153 = vadd.f32 %v1104, %v1152
        %v1154 = vpop.f32.mrb[0].mxu0
        %v1155 = vpop.f32.mrb[0].mxu0
        %v1156 = vpop.f32.mrb[0].mxu0
        %1157 = vdwg.mxu0
        %v1158 = vmax.f32 %v1153, 0.0
        %v1159 = vld [vmem:[#allocation19] sm:$0x1]
        %v1161 = vlaneseq
        %v1162 = vshrl.u32 %v1161, 7
        %v1163 = vsub.s32 0, %v1162
        %v1164 = vrot.slane %v1159, %v1163
        %v1166 = vmul.f32 %v1158, %v1164
        %1167 = vst.msk [vmem:[%s915] sm:$0xff] %vm934, %v1166
        %1168 = vst.msk [vmem:[%s922] sm:$0xff] %vm934, %v1030
        %1169 = vst.msk [vmem:[%s929] sm:$0xff] %vm934, %v1094
        %v1170 = vpack.c.bf16 %v1166, %v1166
        %v1171 = vpack.c.bf16 %v1030, %v1030
        %v1172 = vpack.c.bf16 %v1094, %v1094
        %v1173 = vlaneseq
        %v1174 = vshrl.u32 %v1173, 7
        %v1175 = vlaneseq
        %v1176 = vand.u32 %v1175, 127
        %s1177 = sld [smem:[#allocation3 + %s59]]
        %v1178 = vstv %s1177
        %vm1179 = vcmp.lt.s32.totalorder %v1174, %v1178
        %vm1180 = vcmp.lt.s32.totalorder %v1176, %v1178
        %vm1181 = vmand %vm1179, %vm1180
        %vm1182 = vcmask 64512
        %v1184 = vsel %vm1182, %v1170, 0
        %v1187 = vsel %vm1182, %v1171, 0
        %1189 = vmatprep.subr.bf16.mxu0 0
        %1190 = vmatpush1.bf16.xpose.msra.mxu0 %v1187
        %1191 = vmatprep.subr.bf16.mxu0 0
        %1192 = vmatpush1.bf16.xpose.msra.mxu0 0
        %1193 = vmatprep.subr.bf16.mxu0 0
        %1194 = vmatpush1.bf16.xpose.msra.mxu0 0
        %1195 = vmatprep.subr.bf16.mxu0 0
        %1196 = vmatpush1.bf16.xpose.msra.mxu0 0
        %1197 = vmatprep.subr.bf16.mxu0 0
        %1198 = vmatpush1.bf16.xpose.msra.mxu0 0
        %1199 = vmatprep.subr.bf16.mxu0 0
        %1200 = vmatpush1.bf16.xpose.msra.mxu0 0
        %1201 = vmatprep.subr.bf16.mxu0 0
        %1202 = vmatpush1.bf16.xpose.msra.mxu0 0
        %1203 = vmatprep.subr.bf16.mxu0 0
        %1204 = vmatpush1.bf16.xpose.msra.mxu0 0
        %1205 = vmatprep.subr.bf16.mxu0 0
        %1206 = vmatpush1.bf16.xpose.msra.mxu0 0
        %1207 = vmatprep.subr.bf16.mxu0 0
        %1208 = vmatpush1.bf16.xpose.msra.mxu0 0
        %1209 = vmatprep.subr.bf16.mxu0 0
        %1210 = vmatpush1.bf16.xpose.msra.mxu0 0
        %1211 = vmatprep.subr.bf16.mxu0 0
        %1212 = vmatpush1.bf16.xpose.msra.mxu0 0
        %1213 = vmatprep.subr.bf16.mxu0 0
        %1214 = vmatpush1.bf16.xpose.msra.mxu0 0
        %1215 = vmatprep.subr.bf16.mxu0 0
        %1216 = vmatpush1.bf16.xpose.msra.mxu0 0
        %1217 = vmatprep.subr.bf16.mxu0 0
        %1218 = vmatpush1.bf16.xpose.msra.mxu0 0
        %1219 = vmatprep.subr.bf16.mxu0 0
        %1220 = vmatpush1.bf16.xpose.msra.mxu0 0
        %1221 = vmatprep.mubr.bf16.mxu0 0
        %1222 = vmatmul.mubr.bf16.gmra.mrb[0].mxu0 %v1184
        %v1223 = vpop.f32.mrb[0].mxu0
        %v1224 = vadd.f32 0.0, %v1223
        %v1225 = vpop.f32.mrb[0].mxu0
        %v1226 = vpop.f32.mrb[0].mxu0
        %v1227 = vpop.f32.mrb[0].mxu0
        %1228 = vdwg.mxu0
        %v1229 = vmul.f32 %v1224, 0.5
        %v1230 = vsel %vm1181, %v1229, -1e+10
        %v1231 = vsel %vm1182, %v1230, -inf
        %1232 = vmax.xlane.f32.xlu0 %v1231
        %v1233 = vpop.xlane.xlu0 %1232
        %v1234 = vsub.f32 %v1230, %v1233
        %v1235 = vmul.f32 %v1234, 1.442695
        %v1236 = vpow.pop %v1235
        %v1237 = vsel %vm1182, %v1236, 0.0
        %1238 = vadd.xlane.f32.xlu0 %v1237
        %v1239 = vpop.xlane.xlu0 %1238
        %v1240 = vrcp.pop %v1239
        %v1241 = vmul.f32 %v1236, %v1240
        %v1242 = vpack.c.bf16 %v1241, %v1241
        %v1244 = vsel %vm1182, %v1242, 0
        %vm1246 = vcmask 1043456
        %v1248 = vsel %vm1246, %v1172, 0
        %1250 = vmatprep.subr.bf16.mxu0 0
        %1251 = vmatpush1.bf16.msra.mxu0 %v1248
        %1252 = vmatprep.subr.bf16.mxu0 0
        %1253 = vmatpush1.bf16.msra.mxu0 0
        %1254 = vmatprep.subr.bf16.mxu0 0
        %1255 = vmatpush1.bf16.msra.mxu0 0
        %1256 = vmatprep.subr.bf16.mxu0 0
        %1257 = vmatpush1.bf16.msra.mxu0 0
        %1258 = vmatprep.subr.bf16.mxu0 0
        %1259 = vmatpush1.bf16.msra.mxu0 0
        %1260 = vmatprep.subr.bf16.mxu0 0
        %1261 = vmatpush1.bf16.msra.mxu0 0
        %1262 = vmatprep.subr.bf16.mxu0 0
        %1263 = vmatpush1.bf16.msra.mxu0 0
        %1264 = vmatprep.subr.bf16.mxu0 0
        %1265 = vmatpush1.bf16.msra.mxu0 0
        %1266 = vmatprep.subr.bf16.mxu0 0
        %1267 = vmatpush1.bf16.msra.mxu0 0
        %1268 = vmatprep.subr.bf16.mxu0 0
        %1269 = vmatpush1.bf16.msra.mxu0 0
        %1270 = vmatprep.subr.bf16.mxu0 0
        %1271 = vmatpush1.bf16.msra.mxu0 0
        %1272 = vmatprep.subr.bf16.mxu0 0
        %1273 = vmatpush1.bf16.msra.mxu0 0
        %1274 = vmatprep.subr.bf16.mxu0 0
        %1275 = vmatpush1.bf16.msra.mxu0 0
        %1276 = vmatprep.subr.bf16.mxu0 0
        %1277 = vmatpush1.bf16.msra.mxu0 0
        %1278 = vmatprep.subr.bf16.mxu0 0
        %1279 = vmatpush1.bf16.msra.mxu0 0
        %1280 = vmatprep.subr.bf16.mxu0 0
        %1281 = vmatpush1.bf16.msra.mxu0 0
        %1282 = vmatprep.mubr.bf16.mxu0 0
        %1283 = vmatmul.mubr.bf16.gmra.mrb[0].mxu0 %v1244
        %v1284 = vpop.f32.mrb[0].mxu0
        %v1285 = vadd.f32 0.0, %v1284
        %v1286 = vpop.f32.mrb[0].mxu0
        %v1287 = vpop.f32.mrb[0].mxu0
        %v1288 = vpop.f32.mrb[0].mxu0
        %1289 = vdwg.mxu0
        %1291 = vrot.lane.b32.xlu0 %v1170, 120
        %v1292 = vpop.permute.xlu0 %1291
        %1294 = vrot.lane.b32.xlu0 %v1171, 120
        %v1295 = vpop.permute.xlu0 %1294
        %v1297 = vsel %vm1182, %v1292, 0
        %v1300 = vsel %vm1182, %v1295, 0
        %1302 = vmatprep.subr.bf16.mxu0 0
        %1303 = vmatpush1.bf16.xpose.msra.mxu0 %v1300
        %1304 = vmatprep.subr.bf16.mxu0 0
        %1305 = vmatpush1.bf16.xpose.msra.mxu0 0
        %1306 = vmatprep.subr.bf16.mxu0 0
        %1307 = vmatpush1.bf16.xpose.msra.mxu0 0
        %1308 = vmatprep.subr.bf16.mxu0 0
        %1309 = vmatpush1.bf16.xpose.msra.mxu0 0
        %1310 = vmatprep.subr.bf16.mxu0 0
        %1311 = vmatpush1.bf16.xpose.msra.mxu0 0
        %1312 = vmatprep.subr.bf16.mxu0 0
        %1313 = vmatpush1.bf16.xpose.msra.mxu0 0
        %1314 = vmatprep.subr.bf16.mxu0 0
        %1315 = vmatpush1.bf16.xpose.msra.mxu0 0
        %1316 = vmatprep.subr.bf16.mxu0 0
        %1317 = vmatpush1.bf16.xpose.msra.mxu0 0
        %1318 = vmatprep.subr.bf16.mxu0 0
        %1319 = vmatpush1.bf16.xpose.msra.mxu0 0
        %1320 = vmatprep.subr.bf16.mxu0 0
        %1321 = vmatpush1.bf16.xpose.msra.mxu0 0
        %1322 = vmatprep.subr.bf16.mxu0 0
        %1323 = vmatpush1.bf16.xpose.msra.mxu0 0
        %1324 = vmatprep.subr.bf16.mxu0 0
        %1325 = vmatpush1.bf16.xpose.msra.mxu0 0
        %1326 = vmatprep.subr.bf16.mxu0 0
        %1327 = vmatpush1.bf16.xpose.msra.mxu0 0
        %1328 = vmatprep.subr.bf16.mxu0 0
        %1329 = vmatpush1.bf16.xpose.msra.mxu0 0
        %1330 = vmatprep.subr.bf16.mxu0 0
        %1331 = vmatpush1.bf16.xpose.msra.mxu0 0
        %1332 = vmatprep.subr.bf16.mxu0 0
        %1333 = vmatpush1.bf16.xpose.msra.mxu0 0
        %1334 = vmatprep.mubr.bf16.mxu0 0
        %1335 = vmatmul.mubr.bf16.gmra.mrb[0].mxu0 %v1297
        %v1336 = vpop.f32.mrb[0].mxu0
        %v1337 = vadd.f32 0.0, %v1336
        %v1338 = vpop.f32.mrb[0].mxu0
        %v1339 = vpop.f32.mrb[0].mxu0
        %v1340 = vpop.f32.mrb[0].mxu0
        %1341 = vdwg.mxu0
        %v1342 = vmul.f32 %v1337, 0.5
        %v1343 = vsel %vm1181, %v1342, -1e+10
        %v1344 = vsel %vm1182, %v1343, -inf
        %1345 = vmax.xlane.f32.xlu0 %v1344
        %v1346 = vpop.xlane.xlu0 %1345
        %v1347 = vsub.f32 %v1343, %v1346
        %v1348 = vmul.f32 %v1347, 1.442695
        %v1349 = vpow.pop %v1348
        %v1350 = vsel %vm1182, %v1349, 0.0
        %1351 = vadd.xlane.f32.xlu0 %v1350
        %v1352 = vpop.xlane.xlu0 %1351
        %v1353 = vrcp.pop %v1352
        %v1354 = vmul.f32 %v1349, %v1353
        %v1355 = vpack.c.bf16 %v1354, %v1354
        %1357 = vrot.lane.b32.xlu0 %v1172, 120
        %v1358 = vpop.permute.xlu0 %1357
        %v1360 = vsel %vm1182, %v1355, 0
        %v1363 = vsel %vm1246, %v1358, 0
        %1365 = vmatprep.subr.bf16.mxu0 0
        %1366 = vmatpush1.bf16.msra.mxu0 %v1363
        %1367 = vmatprep.subr.bf16.mxu0 0
        %1368 = vmatpush1.bf16.msra.mxu0 0
        %1369 = vmatprep.subr.bf16.mxu0 0
        %1370 = vmatpush1.bf16.msra.mxu0 0
        %1371 = vmatprep.subr.bf16.mxu0 0
        %1372 = vmatpush1.bf16.msra.mxu0 0
        %1373 = vmatprep.subr.bf16.mxu0 0
        %1374 = vmatpush1.bf16.msra.mxu0 0
        %1375 = vmatprep.subr.bf16.mxu0 0
        %1376 = vmatpush1.bf16.msra.mxu0 0
        %1377 = vmatprep.subr.bf16.mxu0 0
        %1378 = vmatpush1.bf16.msra.mxu0 0
        %1379 = vmatprep.subr.bf16.mxu0 0
        %1380 = vmatpush1.bf16.msra.mxu0 0
        %1381 = vmatprep.subr.bf16.mxu0 0
        %1382 = vmatpush1.bf16.msra.mxu0 0
        %1383 = vmatprep.subr.bf16.mxu0 0
        %1384 = vmatpush1.bf16.msra.mxu0 0
        %1385 = vmatprep.subr.bf16.mxu0 0
        %1386 = vmatpush1.bf16.msra.mxu0 0
        %1387 = vmatprep.subr.bf16.mxu0 0
        %1388 = vmatpush1.bf16.msra.mxu0 0
        %1389 = vmatprep.subr.bf16.mxu0 0
        %1390 = vmatpush1.bf16.msra.mxu0 0
        %1391 = vmatprep.subr.bf16.mxu0 0
        %1392 = vmatpush1.bf16.msra.mxu0 0
        %1393 = vmatprep.subr.bf16.mxu0 0
        %1394 = vmatpush1.bf16.msra.mxu0 0
        %1395 = vmatprep.subr.bf16.mxu0 0
        %1396 = vmatpush1.bf16.msra.mxu0 0
        %1397 = vmatprep.mubr.bf16.mxu0 0
        %1398 = vmatmul.mubr.bf16.gmra.mrb[0].mxu0 %v1360
        %v1399 = vpop.f32.mrb[0].mxu0
        %v1400 = vadd.f32 0.0, %v1399
        %v1401 = vpop.f32.mrb[0].mxu0
        %v1402 = vpop.f32.mrb[0].mxu0
        %v1403 = vpop.f32.mrb[0].mxu0
        %1404 = vdwg.mxu0
        %1405 = vrot.lane.b32.xlu0 %v1170, 112
        %v1406 = vpop.permute.xlu0 %1405
        %1407 = vrot.lane.b32.xlu0 %v1171, 112
        %v1408 = vpop.permute.xlu0 %1407
        %v1410 = vsel %vm1182, %v1406, 0
        %v1413 = vsel %vm1182, %v1408, 0
        %1415 = vmatprep.subr.bf16.mxu0 0
        %1416 = vmatpush1.bf16.xpose.msra.mxu0 %v1413
        %1417 = vmatprep.subr.bf16.mxu0 0
        %1418 = vmatpush1.bf16.xpose.msra.mxu0 0
        %1419 = vmatprep.subr.bf16.mxu0 0
        %1420 = vmatpush1.bf16.xpose.msra.mxu0 0
        %1421 = vmatprep.subr.bf16.mxu0 0
        %1422 = vmatpush1.bf16.xpose.msra.mxu0 0
        %1423 = vmatprep.subr.bf16.mxu0 0
        %1424 = vmatpush1.bf16.xpose.msra.mxu0 0
        %1425 = vmatprep.subr.bf16.mxu0 0
        %1426 = vmatpush1.bf16.xpose.msra.mxu0 0
        %1427 = vmatprep.subr.bf16.mxu0 0
        %1428 = vmatpush1.bf16.xpose.msra.mxu0 0
        %1429 = vmatprep.subr.bf16.mxu0 0
        %1430 = vmatpush1.bf16.xpose.msra.mxu0 0
        %1431 = vmatprep.subr.bf16.mxu0 0
        %1432 = vmatpush1.bf16.xpose.msra.mxu0 0
        %1433 = vmatprep.subr.bf16.mxu0 0
        %1434 = vmatpush1.bf16.xpose.msra.mxu0 0
        %1435 = vmatprep.subr.bf16.mxu0 0
        %1436 = vmatpush1.bf16.xpose.msra.mxu0 0
        %1437 = vmatprep.subr.bf16.mxu0 0
        %1438 = vmatpush1.bf16.xpose.msra.mxu0 0
        %1439 = vmatprep.subr.bf16.mxu0 0
        %1440 = vmatpush1.bf16.xpose.msra.mxu0 0
        %1441 = vmatprep.subr.bf16.mxu0 0
        %1442 = vmatpush1.bf16.xpose.msra.mxu0 0
        %1443 = vmatprep.subr.bf16.mxu0 0
        %1444 = vmatpush1.bf16.xpose.msra.mxu0 0
        %1445 = vmatprep.subr.bf16.mxu0 0
        %1446 = vmatpush1.bf16.xpose.msra.mxu0 0
        %1447 = vmatprep.mubr.bf16.mxu0 0
        %1448 = vmatmul.mubr.bf16.gmra.mrb[0].mxu0 %v1410
        %v1449 = vpop.f32.mrb[0].mxu0
        %v1450 = vadd.f32 0.0, %v1449
        %v1451 = vpop.f32.mrb[0].mxu0
        %v1452 = vpop.f32.mrb[0].mxu0
        %v1453 = vpop.f32.mrb[0].mxu0
        %1454 = vdwg.mxu0
        %v1455 = vmul.f32 %v1450, 0.5
        %v1456 = vsel %vm1181, %v1455, -1e+10
        %v1457 = vsel %vm1182, %v1456, -inf
        %1458 = vmax.xlane.f32.xlu0 %v1457
        %v1459 = vpop.xlane.xlu0 %1458
        %v1460 = vsub.f32 %v1456, %v1459
        %v1461 = vmul.f32 %v1460, 1.442695
        %v1462 = vpow.pop %v1461
        %v1463 = vsel %vm1182, %v1462, 0.0
        %1464 = vadd.xlane.f32.xlu0 %v1463
        %v1465 = vpop.xlane.xlu0 %1464
        %v1466 = vrcp.pop %v1465
        %v1467 = vmul.f32 %v1462, %v1466
        %v1468 = vpack.c.bf16 %v1467, %v1467
        %1469 = vrot.lane.b32.xlu0 %v1172, 112
        %v1470 = vpop.permute.xlu0 %1469
        %v1472 = vsel %vm1182, %v1468, 0
        %v1475 = vsel %vm1246, %v1470, 0
        %1477 = vmatprep.subr.bf16.mxu0 0
        %1478 = vmatpush1.bf16.msra.mxu0 %v1475
        %1479 = vmatprep.subr.bf16.mxu0 0
        %1480 = vmatpush1.bf16.msra.mxu0 0
        %1481 = vmatprep.subr.bf16.mxu0 0
        %1482 = vmatpush1.bf16.msra.mxu0 0
        %1483 = vmatprep.subr.bf16.mxu0 0
        %1484 = vmatpush1.bf16.msra.mxu0 0
        %1485 = vmatprep.subr.bf16.mxu0 0
        %1486 = vmatpush1.bf16.msra.mxu0 0
        %1487 = vmatprep.subr.bf16.mxu0 0
        %1488 = vmatpush1.bf16.msra.mxu0 0
        %1489 = vmatprep.subr.bf16.mxu0 0
        %1490 = vmatpush1.bf16.msra.mxu0 0
        %1491 = vmatprep.subr.bf16.mxu0 0
        %1492 = vmatpush1.bf16.msra.mxu0 0
        %1493 = vmatprep.subr.bf16.mxu0 0
        %1494 = vmatpush1.bf16.msra.mxu0 0
        %1495 = vmatprep.subr.bf16.mxu0 0
        %1496 = vmatpush1.bf16.msra.mxu0 0
        %1497 = vmatprep.subr.bf16.mxu0 0
        %1498 = vmatpush1.bf16.msra.mxu0 0
        %1499 = vmatprep.subr.bf16.mxu0 0
        %1500 = vmatpush1.bf16.msra.mxu0 0
        %1501 = vmatprep.subr.bf16.mxu0 0
        %1502 = vmatpush1.bf16.msra.mxu0 0
        %1503 = vmatprep.subr.bf16.mxu0 0
        %1504 = vmatpush1.bf16.msra.mxu0 0
        %1505 = vmatprep.subr.bf16.mxu0 0
        %1506 = vmatpush1.bf16.msra.mxu0 0
        %1507 = vmatprep.subr.bf16.mxu0 0
        %1508 = vmatpush1.bf16.msra.mxu0 0
        %1509 = vmatprep.mubr.bf16.mxu0 0
        %1510 = vmatmul.mubr.bf16.gmra.mrb[0].mxu0 %v1472
        %v1511 = vpop.f32.mrb[0].mxu0
        %v1512 = vadd.f32 0.0, %v1511
        %v1513 = vpop.f32.mrb[0].mxu0
        %v1514 = vpop.f32.mrb[0].mxu0
        %v1515 = vpop.f32.mrb[0].mxu0
        %1516 = vdwg.mxu0
        %1517 = vrot.lane.b32.xlu0 %v1170, 104
        %v1518 = vpop.permute.xlu0 %1517
        %1519 = vrot.lane.b32.xlu0 %v1171, 104
        %v1520 = vpop.permute.xlu0 %1519
        %v1522 = vsel %vm1182, %v1518, 0
        %v1525 = vsel %vm1182, %v1520, 0
        %1527 = vmatprep.subr.bf16.mxu0 0
        %1528 = vmatpush1.bf16.xpose.msra.mxu0 %v1525
        %1529 = vmatprep.subr.bf16.mxu0 0
        %1530 = vmatpush1.bf16.xpose.msra.mxu0 0
        %1531 = vmatprep.subr.bf16.mxu0 0
        %1532 = vmatpush1.bf16.xpose.msra.mxu0 0
        %1533 = vmatprep.subr.bf16.mxu0 0
        %1534 = vmatpush1.bf16.xpose.msra.mxu0 0
        %1535 = vmatprep.subr.bf16.mxu0 0
        %1536 = vmatpush1.bf16.xpose.msra.mxu0 0
        %1537 = vmatprep.subr.bf16.mxu0 0
        %1538 = vmatpush1.bf16.xpose.msra.mxu0 0
        %1539 = vmatprep.subr.bf16.mxu0 0
        %1540 = vmatpush1.bf16.xpose.msra.mxu0 0
        %1541 = vmatprep.subr.bf16.mxu0 0
        %1542 = vmatpush1.bf16.xpose.msra.mxu0 0
        %1543 = vmatprep.subr.bf16.mxu0 0
        %1544 = vmatpush1.bf16.xpose.msra.mxu0 0
        %1545 = vmatprep.subr.bf16.mxu0 0
        %1546 = vmatpush1.bf16.xpose.msra.mxu0 0
        %1547 = vmatprep.subr.bf16.mxu0 0
        %1548 = vmatpush1.bf16.xpose.msra.mxu0 0
        %1549 = vmatprep.subr.bf16.mxu0 0
        %1550 = vmatpush1.bf16.xpose.msra.mxu0 0
        %1551 = vmatprep.subr.bf16.mxu0 0
        %1552 = vmatpush1.bf16.xpose.msra.mxu0 0
        %1553 = vmatprep.subr.bf16.mxu0 0
        %1554 = vmatpush1.bf16.xpose.msra.mxu0 0
        %1555 = vmatprep.subr.bf16.mxu0 0
        %1556 = vmatpush1.bf16.xpose.msra.mxu0 0
        %1557 = vmatprep.subr.bf16.mxu0 0
        %1558 = vmatpush1.bf16.xpose.msra.mxu0 0
        %1559 = vmatprep.mubr.bf16.mxu0 0
        %1560 = vmatmul.mubr.bf16.gmra.mrb[0].mxu0 %v1522
        %v1561 = vpop.f32.mrb[0].mxu0
        %v1562 = vadd.f32 0.0, %v1561
        %v1563 = vpop.f32.mrb[0].mxu0
        %v1564 = vpop.f32.mrb[0].mxu0
        %v1565 = vpop.f32.mrb[0].mxu0
        %1566 = vdwg.mxu0
        %v1567 = vmul.f32 %v1562, 0.5
        %v1568 = vsel %vm1181, %v1567, -1e+10
        %v1569 = vsel %vm1182, %v1568, -inf
        %1570 = vmax.xlane.f32.xlu0 %v1569
        %v1571 = vpop.xlane.xlu0 %1570
        %v1572 = vsub.f32 %v1568, %v1571
        %v1573 = vmul.f32 %v1572, 1.442695
        %v1574 = vpow.pop %v1573
        %v1575 = vsel %vm1182, %v1574, 0.0
        %1576 = vadd.xlane.f32.xlu0 %v1575
        %v1577 = vpop.xlane.xlu0 %1576
        %v1578 = vrcp.pop %v1577
        %v1579 = vmul.f32 %v1574, %v1578
        %v1580 = vpack.c.bf16 %v1579, %v1579
        %1581 = vrot.lane.b32.xlu0 %v1172, 104
        %v1582 = vpop.permute.xlu0 %1581
        %v1584 = vsel %vm1182, %v1580, 0
        %v1587 = vsel %vm1246, %v1582, 0
        %1589 = vmatprep.subr.bf16.mxu0 0
        %1590 = vmatpush1.bf16.msra.mxu0 %v1587
        %1591 = vmatprep.subr.bf16.mxu0 0
        %1592 = vmatpush1.bf16.msra.mxu0 0
        %1593 = vmatprep.subr.bf16.mxu0 0
        %1594 = vmatpush1.bf16.msra.mxu0 0
        %1595 = vmatprep.subr.bf16.mxu0 0
        %1596 = vmatpush1.bf16.msra.mxu0 0
        %1597 = vmatprep.subr.bf16.mxu0 0
        %1598 = vmatpush1.bf16.msra.mxu0 0
        %1599 = vmatprep.subr.bf16.mxu0 0
        %1600 = vmatpush1.bf16.msra.mxu0 0
        %1601 = vmatprep.subr.bf16.mxu0 0
        %1602 = vmatpush1.bf16.msra.mxu0 0
        %1603 = vmatprep.subr.bf16.mxu0 0
        %1604 = vmatpush1.bf16.msra.mxu0 0
        %1605 = vmatprep.subr.bf16.mxu0 0
        %1606 = vmatpush1.bf16.msra.mxu0 0
        %1607 = vmatprep.subr.bf16.mxu0 0
        %1608 = vmatpush1.bf16.msra.mxu0 0
        %1609 = vmatprep.subr.bf16.mxu0 0
        %1610 = vmatpush1.bf16.msra.mxu0 0
        %1611 = vmatprep.subr.bf16.mxu0 0
        %1612 = vmatpush1.bf16.msra.mxu0 0
        %1613 = vmatprep.subr.bf16.mxu0 0
        %1614 = vmatpush1.bf16.msra.mxu0 0
        %1615 = vmatprep.subr.bf16.mxu0 0
        %1616 = vmatpush1.bf16.msra.mxu0 0
        %1617 = vmatprep.subr.bf16.mxu0 0
        %1618 = vmatpush1.bf16.msra.mxu0 0
        %1619 = vmatprep.subr.bf16.mxu0 0
        %1620 = vmatpush1.bf16.msra.mxu0 0
        %1621 = vmatprep.mubr.bf16.mxu0 0
        %1622 = vmatmul.mubr.bf16.gmra.mrb[0].mxu0 %v1584
        %v1623 = vpop.f32.mrb[0].mxu0
        %v1624 = vadd.f32 0.0, %v1623
        %v1625 = vpop.f32.mrb[0].mxu0
        %v1626 = vpop.f32.mrb[0].mxu0
        %v1627 = vpop.f32.mrb[0].mxu0
        %1628 = vdwg.mxu0
        %1630 = vrot.lane.b32.xlu0 %v1400, 8
        %v1631 = vpop.permute.xlu0 %1630
        %1634 = vrot.lane.b32.xlu0 %v1512, 16
        %v1635 = vpop.permute.xlu0 %1634
        %1638 = vrot.lane.b32.xlu0 %v1624, 24
        %v1639 = vpop.permute.xlu0 %1638
        %v1641 = vsel %vm1182, %v1285, %v1631
        %vm1642 = vcmask 130048
        %v1643 = vsel %vm1642, %v1641, %v1635
        %vm1644 = vcmask 195584
        %v1645 = vsel %vm1644, %v1643, %v1639
        %v1646 = vpack.c.bf16 %v1645, %v1645
        %v1647 = vld [vmem:[#allocation21] sm:$0xf]
        %v1648 = vld [vmem:[#allocation21 + $0x4] sm:$0xf]
        %v1649 = vld [vmem:[#allocation21 + $0x8] sm:$0xf]
        %v1650 = vld [vmem:[#allocation21 + $0xc] sm:$0xf]
        %v1651 = vld [vmem:[#allocation22] sm:$0x1]
        %v1653 = vlaneseq
        %v1654 = vshrl.u32 %v1653, 7
        %v1655 = vsub.s32 0, %v1654
        %v1656 = vrot.slane %v1651, %v1655
        %v1662 = vunpack.c.l.b16 %v1647
        %v1663 = vunpack.c.l.b16 %v1648
        %v1664 = vunpack.c.l.b16 %v1649
        %v1665 = vunpack.c.l.b16 %v1650
        %v1666 = vpack.c.b16 %v1663, %v1662
        %v1667 = vpack.c.b16 %v1665, %v1664
        %v1671 = vsel %vm934, %v1646, 0
        %1673 = vmatprep.subr.bf16.mxu0 0
        %1674 = vmatpush1.bf16.msra.mxu0 %v1666
        %1675 = vmatprep.subr.bf16.mxu0 0
        %1676 = vmatpush1.bf16.msra.mxu0 %v1667
        %1677 = vmatprep.subr.bf16.mxu0 0
        %1678 = vmatpush1.bf16.msra.mxu0 0
        %1679 = vmatprep.subr.bf16.mxu0 0
        %1680 = vmatpush1.bf16.msra.mxu0 0
        %1681 = vmatprep.subr.bf16.mxu0 0
        %1682 = vmatpush1.bf16.msra.mxu0 0
        %1683 = vmatprep.subr.bf16.mxu0 0
        %1684 = vmatpush1.bf16.msra.mxu0 0
        %1685 = vmatprep.subr.bf16.mxu0 0
        %1686 = vmatpush1.bf16.msra.mxu0 0
        %1687 = vmatprep.subr.bf16.mxu0 0
        %1688 = vmatpush1.bf16.msra.mxu0 0
        %1689 = vmatprep.subr.bf16.mxu0 0
        %1690 = vmatpush1.bf16.msra.mxu0 0
        %1691 = vmatprep.subr.bf16.mxu0 0
        %1692 = vmatpush1.bf16.msra.mxu0 0
        %1693 = vmatprep.subr.bf16.mxu0 0
        %1694 = vmatpush1.bf16.msra.mxu0 0
        %1695 = vmatprep.subr.bf16.mxu0 0
        %1696 = vmatpush1.bf16.msra.mxu0 0
        %1697 = vmatprep.subr.bf16.mxu0 0
        %1698 = vmatpush1.bf16.msra.mxu0 0
        %1699 = vmatprep.subr.bf16.mxu0 0
        %1700 = vmatpush1.bf16.msra.mxu0 0
        %1701 = vmatprep.subr.bf16.mxu0 0
        %1702 = vmatpush1.bf16.msra.mxu0 0
        %1703 = vmatprep.subr.bf16.mxu0 0
        %1704 = vmatpush1.bf16.msra.mxu0 0
        %1705 = vmatprep.mubr.bf16.mxu0 0
        %1706 = vmatmul.mubr.bf16.gmra.mrb[0].mxu0 %v1671
        %v1707 = vpop.f32.mrb[0].mxu0
        %v1708 = vadd.f32 %v1656, %v1707
        %v1709 = vpop.f32.mrb[0].mxu0
        %v1710 = vpop.f32.mrb[0].mxu0
        %v1711 = vpop.f32.mrb[0].mxu0
        %1712 = vdwg.mxu0
        %v1713 = vmax.f32 %v1708, 0.0
        %v1714 = vadd.f32 %v1713, %v962
        %v1715 = vpack.c.bf16 %v1714, %v1714
        %v1716 = vld [vmem:[#allocation24] sm:$0xf]
        %v1717 = vld [vmem:[#allocation24 + $0x4] sm:$0xf]
        %v1718 = vld [vmem:[#allocation24 + $0x8] sm:$0xf]
        %v1719 = vld [vmem:[#allocation24 + $0xc] sm:$0xf]
        %v1720 = vld [vmem:[#allocation25] sm:$0x1]
        %v1722 = vlaneseq
        %v1723 = vshrl.u32 %v1722, 7
        %v1724 = vsub.s32 0, %v1723
        %v1725 = vrot.slane %v1720, %v1724
        %v1731 = vunpack.c.l.b16 %v1716
        %v1732 = vunpack.c.l.b16 %v1717
        %v1733 = vunpack.c.l.b16 %v1718
        %v1734 = vunpack.c.l.b16 %v1719
        %v1735 = vpack.c.b16 %v1732, %v1731
        %v1736 = vpack.c.b16 %v1734, %v1733
        %v1740 = vsel %vm934, %v1715, 0
        %1742 = vmatprep.subr.bf16.mxu0 0
        %1743 = vmatpush1.bf16.msra.mxu0 %v1735
        %1744 = vmatprep.subr.bf16.mxu0 0
        %1745 = vmatpush1.bf16.msra.mxu0 %v1736
        %1746 = vmatprep.subr.bf16.mxu0 0
        %1747 = vmatpush1.bf16.msra.mxu0 0
        %1748 = vmatprep.subr.bf16.mxu0 0
        %1749 = vmatpush1.bf16.msra.mxu0 0
        %1750 = vmatprep.subr.bf16.mxu0 0
        %1751 = vmatpush1.bf16.msra.mxu0 0
        %1752 = vmatprep.subr.bf16.mxu0 0
        %1753 = vmatpush1.bf16.msra.mxu0 0
        %1754 = vmatprep.subr.bf16.mxu0 0
        %1755 = vmatpush1.bf16.msra.mxu0 0
        %1756 = vmatprep.subr.bf16.mxu0 0
        %1757 = vmatpush1.bf16.msra.mxu0 0
        %1758 = vmatprep.subr.bf16.mxu0 0
        %1759 = vmatpush1.bf16.msra.mxu0 0
        %1760 = vmatprep.subr.bf16.mxu0 0
        %1761 = vmatpush1.bf16.msra.mxu0 0
        %1762 = vmatprep.subr.bf16.mxu0 0
        %1763 = vmatpush1.bf16.msra.mxu0 0
        %1764 = vmatprep.subr.bf16.mxu0 0
        %1765 = vmatpush1.bf16.msra.mxu0 0
        %1766 = vmatprep.subr.bf16.mxu0 0
        %1767 = vmatpush1.bf16.msra.mxu0 0
        %1768 = vmatprep.subr.bf16.mxu0 0
        %1769 = vmatpush1.bf16.msra.mxu0 0
        %1770 = vmatprep.subr.bf16.mxu0 0
        %1771 = vmatpush1.bf16.msra.mxu0 0
        %1772 = vmatprep.subr.bf16.mxu0 0
        %1773 = vmatpush1.bf16.msra.mxu0 0
        %1774 = vmatprep.mubr.bf16.mxu0 0
        %1775 = vmatmul.mubr.bf16.gmra.mrb[0].mxu0 %v1740
        %v1776 = vpop.f32.mrb[0].mxu0
        %v1777 = vadd.f32 %v1725, %v1776
        %v1778 = vpop.f32.mrb[0].mxu0
        %v1779 = vpop.f32.mrb[0].mxu0
        %v1780 = vpop.f32.mrb[0].mxu0
        %1781 = vdwg.mxu0
        %v1782 = vmax.f32 %v1777, 0.0
        %v1783 = vpack.c.bf16 %v1782, %v1782
        %v1784 = vld [vmem:[#allocation27] sm:$0xf]
        %v1785 = vld [vmem:[#allocation27 + $0x4] sm:$0xf]
        %v1786 = vld [vmem:[#allocation27 + $0x8] sm:$0xf]
        %v1787 = vld [vmem:[#allocation27 + $0xc] sm:$0xf]
        %v1788 = vld [vmem:[#allocation27 + $0x10] sm:$0xf]
        %v1789 = vld [vmem:[#allocation27 + $0x14] sm:$0xf]
        %v1790 = vld [vmem:[#allocation27 + $0x18] sm:$0xf]
        %v1791 = vld [vmem:[#allocation27 + $0x1c] sm:$0xf]
        %v1792 = vld [vmem:[#allocation27 + $0x20] sm:$0xf]
        %v1793 = vld [vmem:[#allocation27 + $0x24] sm:$0xf]
        %v1794 = vld [vmem:[#allocation27 + $0x28] sm:$0xf]
        %v1795 = vld [vmem:[#allocation27 + $0x2c] sm:$0xf]
        %v1796 = vld [vmem:[#allocation27 + $0x30] sm:$0xf]
        %v1797 = vld [vmem:[#allocation27 + $0x34] sm:$0xf]
        %v1798 = vld [vmem:[#allocation27 + $0x38] sm:$0xf]
        %v1799 = vld [vmem:[#allocation27 + $0x3c] sm:$0xf]
        %v1800 = vld [vmem:[#allocation28] sm:$0x1]
        %v1802 = vlaneseq
        %v1803 = vshrl.u32 %v1802, 7
        %v1804 = vsub.s32 0, %v1803
        %v1805 = vrot.slane %v1800, %v1804
        %v1823 = vunpack.c.l.b16 %v1784
        %v1824 = vunpack.c.l.b16 %v1785
        %v1825 = vunpack.c.l.b16 %v1786
        %v1826 = vunpack.c.l.b16 %v1787
        %v1827 = vunpack.c.l.b16 %v1788
        %v1828 = vunpack.c.l.b16 %v1789
        %v1829 = vunpack.c.l.b16 %v1790
        %v1830 = vunpack.c.l.b16 %v1791
        %v1831 = vunpack.c.l.b16 %v1792
        %v1832 = vunpack.c.l.b16 %v1793
        %v1833 = vunpack.c.l.b16 %v1794
        %v1834 = vunpack.c.l.b16 %v1795
        %v1835 = vunpack.c.l.b16 %v1796
        %v1836 = vunpack.c.l.b16 %v1797
        %v1837 = vunpack.c.l.b16 %v1798
        %v1838 = vunpack.c.l.b16 %v1799
        %v1839 = vpack.c.b16 %v1824, %v1823
        %v1840 = vpack.c.b16 %v1826, %v1825
        %v1841 = vpack.c.b16 %v1828, %v1827
        %v1842 = vpack.c.b16 %v1830, %v1829
        %v1843 = vpack.c.b16 %v1832, %v1831
        %v1844 = vpack.c.b16 %v1834, %v1833
        %v1845 = vpack.c.b16 %v1836, %v1835
        %v1846 = vpack.c.b16 %v1838, %v1837
        %1855 = vmatprep.subr.bf16.mxu0 0
        %1856 = vmatpush1.bf16.msra.mxu0 %v1839
        %1857 = vmatprep.subr.bf16.mxu0 0
        %1858 = vmatpush1.bf16.msra.mxu0 %v1840
        %1859 = vmatprep.subr.bf16.mxu0 0
        %1860 = vmatpush1.bf16.msra.mxu0 %v1841
        %1861 = vmatprep.subr.bf16.mxu0 0
        %1862 = vmatpush1.bf16.msra.mxu0 %v1842
        %1863 = vmatprep.subr.bf16.mxu0 0
        %1864 = vmatpush1.bf16.msra.mxu0 %v1843
        %1865 = vmatprep.subr.bf16.mxu0 0
        %1866 = vmatpush1.bf16.msra.mxu0 %v1844
        %1867 = vmatprep.subr.bf16.mxu0 0
        %1868 = vmatpush1.bf16.msra.mxu0 %v1845
        %1869 = vmatprep.subr.bf16.mxu0 0
        %1870 = vmatpush1.bf16.msra.mxu0 %v1846
        %1871 = vmatprep.subr.bf16.mxu0 0
        %1872 = vmatpush1.bf16.msra.mxu0 0
        %1873 = vmatprep.subr.bf16.mxu0 0
        %1874 = vmatpush1.bf16.msra.mxu0 0
        %1875 = vmatprep.subr.bf16.mxu0 0
        %1876 = vmatpush1.bf16.msra.mxu0 0
        %1877 = vmatprep.subr.bf16.mxu0 0
        %1878 = vmatpush1.bf16.msra.mxu0 0
        %1879 = vmatprep.subr.bf16.mxu0 0
        %1880 = vmatpush1.bf16.msra.mxu0 0
        %1881 = vmatprep.subr.bf16.mxu0 0
        %1882 = vmatpush1.bf16.msra.mxu0 0
        %1883 = vmatprep.subr.bf16.mxu0 0
        %1884 = vmatpush1.bf16.msra.mxu0 0
        %1885 = vmatprep.subr.bf16.mxu0 0
        %1886 = vmatpush1.bf16.msra.mxu0 0
        %1887 = vmatprep.mubr.bf16.mxu0 0
        %1888 = vmatmul.mubr.bf16.gmra.mrb[0].mxu0 %v1783
        %v1889 = vpop.f32.mrb[0].mxu0
        %v1890 = vadd.f32 %v1805, %v1889
        %v1891 = vpop.f32.mrb[0].mxu0
        %v1892 = vpop.f32.mrb[0].mxu0
        %v1893 = vpop.f32.mrb[0].mxu0
        %1894 = vdwg.mxu0
        %v1895 = vmax.f32 %v1890, 0.0
        %v1896 = vld [vmem:[#allocation30] sm:$0x1]
        %v1897 = vld [vmem:[#allocation31] sm:$0x1]
        %v1898 = vsel %vm934, %v1895, 0.0
        %1899 = vadd.xlane.f32.xlu0 %v1898
        %v1900 = vpop.xlane.xlu0 %1899
        %v1901 = vmul.f32 %v1900, %v938
        %v1902 = vsub.f32 %v1895, %v1901
        %v1903 = vmul.f32 %v1902, %v1902
        %v1904 = vsel %vm934, %v1903, 0.0
        %1905 = vadd.xlane.f32.xlu0 %v1904
        %v1906 = vpop.xlane.xlu0 %1905
        %v1907 = vmul.f32 %v1906, %v938
        %v1908 = vadd.f32 %v1907, 1e-05
        %v1909 = vrsqrt.pop %v1908
        %v1910 = vmul.f32 %v1902, %v1909
        %v1912 = vlaneseq
        %v1913 = vshrl.u32 %v1912, 7
        %v1914 = vsub.s32 0, %v1913
        %v1915 = vrot.slane %v1896, %v1914
        %v1917 = vmul.f32 %v1910, %v1915
        %v1919 = vlaneseq
        %v1920 = vshrl.u32 %v1919, 7
        %v1921 = vsub.s32 0, %v1920
        %v1922 = vrot.slane %v1897, %v1921
        %v1924 = vadd.f32 %v1917, %v1922
        %1925 = vst.msk [vmem:[%s908] sm:$0xff] %vm934, %v1924
        %s1926 = sand.u32 %s450, 1
        %s1927 = scalar_lea.sflag [#allocation6], %s1926
        %s1928 = sand.u32 %s450, 1
        %s1929 = smul.addr %s1928, 8
        %s1930 = scalar_lea.vmem [#allocation33], %s1929
        %s1931 = sand.u32 %s59, 1
        %s1932 = scalar_lea.sflag [#allocation35], %s1931
        %s1933 = sand.u32 %s476, 1
        %s1934 = smul.addr %s1933, 8
        %s1935 = scalar_lea.vmem [#allocation34], %s1934
        %s1936 = sand.u32 %s59, 1
        %s1937 = scalar_lea.sflag [#allocation35], %s1936
        %s1938 = sand.u32 %s502, 1
        %s1939 = smul.addr %s1938, 8
        %s1940 = scalar_lea.vmem [#allocation36], %s1939
        %s1941 = sand.u32 %s528, 1
        %s1942 = scalar_lea.sflag [#allocation38], %s1941
        %s1943 = sand.u32 %s528, 1
        %s1944 = smul.addr %s1943, 8
        %s1945 = scalar_lea.vmem [#allocation37], %s1944
        // Predicated region
        $region165: #{tpu_custom_call.1} parent=91 // pred_check
          %p1946 = pneg %p460
        $region166: #{tpu_custom_call.1} parent=91 // pred_check_branch
          %1948 = sbr.rel (%p1946) target = $region168
        $region167: #{tpu_custom_call.1} parent=91 // pred_region
          %s1950 = ssub.s32 128, 128
          %1951 = vsyncadd %s1927, %s1950
          %s1952 = smul.addr %s59, 128
          %s1953 = scalar_lea.hbm %s19, %s1952
          %s1955 = sshll.u32 %s1930, 4
          %s1956 = int_to_ptr.vmem [resolvable:$true] %s1955
          %1958 = dma.vmem_to_hbm [thread:$0]  %s1956, 128, %s1953, %s1927
        $region168: #{tpu_custom_call.1} parent=91 // pred_fallthru
          _
        // Predicated region
        $region169: #{tpu_custom_call.1} parent=91 // pred_check
          %p1959 = pneg %p486
        $region170: #{tpu_custom_call.1} parent=91 // pred_check_branch
          %1961 = sbr.rel (%p1959) target = $region172
        $region171: #{tpu_custom_call.1} parent=91 // pred_region
          %s1963 = ssub.s32 128, 128
          %1964 = vsyncadd %s1932, %s1963
          %s1965 = smul.addr %s59, 128
          %s1966 = scalar_lea.hbm %s20, %s1965
          %s1968 = sshll.u32 %s1935, 4
          %s1969 = int_to_ptr.vmem [resolvable:$true] %s1968
          %1971 = dma.vmem_to_hbm [thread:$0]  %s1969, 128, %s1966, %s1932
        $region172: #{tpu_custom_call.1} parent=91 // pred_fallthru
          _
        // Predicated region
        $region173: #{tpu_custom_call.1} parent=91 // pred_check
          %p1972 = pneg %p512
        $region174: #{tpu_custom_call.1} parent=91 // pred_check_branch
          %1974 = sbr.rel (%p1972) target = $region176
        $region175: #{tpu_custom_call.1} parent=91 // pred_region
          %s1976 = ssub.s32 128, 128
          %1977 = vsyncadd %s1937, %s1976
          %s1978 = smul.addr %s59, 128
          %s1979 = scalar_lea.hbm %s21, %s1978
          %s1981 = sshll.u32 %s1940, 4
          %s1982 = int_to_ptr.vmem [resolvable:$true] %s1981
          %1984 = dma.vmem_to_hbm [thread:$0]  %s1982, 128, %s1979, %s1937
        $region176: #{tpu_custom_call.1} parent=91 // pred_fallthru
          _
        // Predicated region
        $region177: #{tpu_custom_call.1} parent=91 // pred_check
          %p1985 = pneg %p538
        $region178: #{tpu_custom_call.1} parent=91 // pred_check_branch
          %1987 = sbr.rel (%p1985) target = $region180
        $region179: #{tpu_custom_call.1} parent=91 // pred_region
          %s1989 = ssub.s32 128, 128
          %1990 = vsyncadd %s1942, %s1989
          %s1991 = smul.addr %s59, 128
          %s1992 = scalar_lea.hbm %s22, %s1991
          %s1994 = sshll.u32 %s1945, 4
          %s1995 = int_to_ptr.vmem [resolvable:$true] %s1994
          %1997 = dma.vmem_to_hbm [thread:$0]  %s1995, 128, %s1992, %s1942
        $region180: #{tpu_custom_call.1} parent=91 // pred_fallthru
          _
      $region92: #{tpu_custom_call.1} parent=5 // pred_fallthru
        _
      %p1998 = scmp.le.s32.totalorder 2, %s54
      // Predicated region
      $region181: #{tpu_custom_call.1} parent=5 // pred_check
        %p1999 = pneg %p1998
      $region182: #{tpu_custom_call.1} parent=5 // pred_check_branch
        %2001 = sbr.rel (%p1999) target = $region184
      $region183: #{tpu_custom_call.1} parent=5 // pred_region
        %s2002 = ssub.s32 %s54, 2
        // Predicated region
        $region185: #{tpu_custom_call.1} parent=183 // pred_check
          %p2003 = pneg %p466
        $region186: #{tpu_custom_call.1} parent=183 // pred_check_branch
          %2005 = sbr.rel (%p2003) target = $region188
        $region187: #{tpu_custom_call.1} parent=183 // pred_region
          %s2006 = sand.u32 %s451, 1
          %s2007 = scalar_lea.sflag [#allocation6], %s2006
          %s2008 = sand.u32 %s451, 1
          %s2009 = smul.addr %s2008, 8
          %s2010 = scalar_lea.vmem [#allocation33], %s2009
          %2011 = dma.done %s2007, 128
        $region188: #{tpu_custom_call.1} parent=183 // pred_fallthru
          _
        // Predicated region
        $region189: #{tpu_custom_call.1} parent=183 // pred_check
          %p2012 = pneg %p492
        $region190: #{tpu_custom_call.1} parent=183 // pred_check_branch
          %2014 = sbr.rel (%p2012) target = $region192
        $region191: #{tpu_custom_call.1} parent=183 // pred_region
          %s2015 = sand.u32 %s60, 1
          %s2016 = scalar_lea.sflag [#allocation35], %s2015
          %s2017 = sand.u32 %s477, 1
          %s2018 = smul.addr %s2017, 8
          %s2019 = scalar_lea.vmem [#allocation34], %s2018
          %2020 = dma.done %s2016, 128
        $region192: #{tpu_custom_call.1} parent=183 // pred_fallthru
          _
        // Predicated region
        $region193: #{tpu_custom_call.1} parent=183 // pred_check
          %p2021 = pneg %p518
        $region194: #{tpu_custom_call.1} parent=183 // pred_check_branch
          %2023 = sbr.rel (%p2021) target = $region196
        $region195: #{tpu_custom_call.1} parent=183 // pred_region
          %s2024 = sand.u32 %s60, 1
          %s2025 = scalar_lea.sflag [#allocation35], %s2024
          %s2026 = sand.u32 %s503, 1
          %s2027 = smul.addr %s2026, 8
          %s2028 = scalar_lea.vmem [#allocation36], %s2027
          %2029 = dma.done %s2025, 128
        $region196: #{tpu_custom_call.1} parent=183 // pred_fallthru
          _
        // Predicated region
        $region197: #{tpu_custom_call.1} parent=183 // pred_check
          %p2030 = pneg %p544
        $region198: #{tpu_custom_call.1} parent=183 // pred_check_branch
          %2032 = sbr.rel (%p2030) target = $region200
        $region199: #{tpu_custom_call.1} parent=183 // pred_region
          %s2033 = sand.u32 %s529, 1
          %s2034 = scalar_lea.sflag [#allocation38], %s2033
          %s2035 = sand.u32 %s529, 1
          %s2036 = smul.addr %s2035, 8
          %s2037 = scalar_lea.vmem [#allocation37], %s2036
          %2038 = dma.done %s2034, 128
        $region200: #{tpu_custom_call.1} parent=183 // pred_fallthru
          _
      $region184: #{tpu_custom_call.1} parent=5 // pred_fallthru
        _
    $region6: #{tpu_custom_call.1} parent=1 // loop_footer
      %s58 = sadd.s32 1, %s54
    $region7: #{tpu_custom_call.1} parent=1 // loop_footer_branch
      %53 = sbr.rel target = $region3
    $region8: #{tpu_custom_call.1} parent=1 // loop_exit
      _
    %2039 = vsyncpa [#allocation5], 1
    %s2040 = scalar_lea.sflag [#allocation5], 1
    %2041 = vsyncpa %s2040, 1
    %2042 = vsyncpa [#allocation8], 1
    %2043 = vsyncpa [#allocation11], 1
    %2044 = vsyncpa [#allocation14], 1
    %2045 = vsyncpa [#allocation17], 1
    %2046 = vsyncpa [#allocation20], 1
    %2047 = vsyncpa [#allocation23], 1
    %2048 = vsyncpa [#allocation26], 1
    %2049 = vsyncpa [#allocation29], 1
    %2050 = vsyncpa [#allocation32], 1
    %2051 = vsyncpa [#allocation6], 1
    %s2052 = scalar_lea.sflag [#allocation6], 1
    %2053 = vsyncpa %s2052, 1
    %2054 = vsyncpa [#allocation35], 1
    %s2055 = scalar_lea.sflag [#allocation35], 1
    %2056 = vsyncpa %s2055, 1
    %2057 = vsyncpa [#allocation38], 1
    %s2058 = scalar_lea.sflag [#allocation38], 1
    %2059 = vsyncpa %s2058, 1

</llo_original>
